<compile_context>
chip_gen: v6e
topology: v6e:2x2x1
jax: 0.10.0
libtpu: 0.0.40
codegen_flags: <defaults>
</compile_context>

<pallas_src>
import jax
import jax.numpy as jnp
from jax.experimental import pallas as pl

B, S, H = 2, 8, 32
NH, KV = 4, 2
G = NH // KV                       # query heads per kv head
HD = H // NH
INNER = 4 * H
EPS = 1e-5
M_RES = 0.5
SCALE = 1.0 / (HD ** 0.5)

# packed-constant (cv) row layout
ROW_BQKV = B * S                   # 16: fused qkv (+rotated) bias
ROW_BFC = ROW_BQKV + 1             # 17: folded fc bias
ROW_BO = ROW_BFC + 1               # 18: [b_o | b_pr]
ROW_MASK = 24                      # 24..24+64: additive block+causal mask
CV_ROWS = ROW_MASK + B * NH * S    # 88


def _layernorm(x, g, b):
    mu = jnp.mean(x, axis=-1, keepdims=True)
    var = jnp.mean(jnp.square(x - mu), axis=-1, keepdims=True)
    return (x - mu) * jax.lax.rsqrt(var + EPS) * g + b


def _rotate_half(x):
    d = x.shape[-1] // 2
    return jnp.concatenate([-x[..., d:], x[..., :d]], axis=-1)


# --------------------------- fused block kernel ---------------------------
def _fused_block_kernel(h_ref, wa_ref, wpr_ref, cv_ref, h_out_ref, k_out_ref, v_out_ref):
    hs = h_ref[...]                                           # (B*S, H)

    # Shared LayerNorm statistics (ln_1 and ln_kv see the same input; affines folded).
    mu = jnp.mean(hs, axis=-1, keepdims=True)
    var = jnp.mean(jnp.square(hs - mu), axis=-1, keepdims=True)
    xhat = (hs - mu) * jax.lax.rsqrt(var + EPS)

    # One fused projection producing [q|kv , rotate_half(q|kv)] (scale + LN folded in).
    qkv2 = (jnp.dot(xhat, wa_ref[:, 0:4 * H], preferred_element_type=jnp.float32)
            + cv_ref[ROW_BQKV:ROW_BQKV + 1, :])               # (B*S, 4H)
    cos_t = cv_ref[0:B * S, 0:2 * H]                          # (B*S, 2H)
    sin_t = cv_ref[0:B * S, 2 * H:4 * H]
    qkvr = qkv2[:, 0:2 * H] * cos_t + qkv2[:, 2 * H:4 * H] * sin_t   # roped q,k ; v untouched

    # Regroup heads lanes -> sublanes ONCE (rows ordered (b, kv-head, group, s)).
    q_blocks = [qkvr[b * S:(b + 1) * S, h * HD:(h + 1) * HD]
                for b in range(B) for h in range(NH)]
    k_blocks = [qkvr[b * S:(b + 1) * S, H + (2 * j) * HD:H + (2 * j + 1) * HD]
                for b in range(B) for j in range(KV)]
    v_blocks = [qkvr[b * S:(b + 1) * S, H + (2 * j + 1) * HD:H + (2 * j + 2) * HD]
                for b in range(B) for j in range(KV)]
    q_all = jnp.concatenate(q_blocks, axis=0)                 # (B*NH*S, HD) = (64, 8)
    k_all = jnp.concatenate(k_blocks, axis=0)                 # (B*KV*S, HD) = (32, 8)
    v_all = jnp.concatenate(v_blocks, axis=0)                 # (32, 8)

    # All (batch, head) attention in one masked matmul pair + one softmax.
    s = jax.lax.dot_general(q_all, k_all, (((1,), (1,)), ((), ())),
                            preferred_element_type=jnp.float32)          # (64, 32)
    s = s + cv_ref[ROW_MASK:ROW_MASK + B * NH * S, 0:B * KV * S]         # block + causal mask
    m = jnp.max(s, axis=-1, keepdims=True)
    e = jnp.exp(s - m)
    l = jnp.sum(e, axis=-1, keepdims=True)
    p = e * pl.reciprocal(l, approx=False)                    # exact recip (keeps 1e-4 tol)
    ctx = jnp.dot(p, v_all, preferred_element_type=jnp.float32)          # (64, 8)

    # Heads back to lanes -> (B*S, H); c_proj (m_residual folded) + residual.
    ctx2d = jnp.concatenate(
        [jnp.concatenate([ctx[b * NH * S + h * S: b * NH * S + (h + 1) * S, :]
                          for h in range(NH)], axis=1)
         for b in range(B)], axis=0)                          # (B*S, H)
    attn = (jnp.dot(ctx2d, wa_ref[:, 8 * H:9 * H], preferred_element_type=jnp.float32)
            + cv_ref[ROW_BO:ROW_BO + 1, 0:H])
    h1 = attn + hs

    # ln_2 statistics (affine folded into fc weights) + MLP + residual.
    mu2 = jnp.mean(h1, axis=-1, keepdims=True)
    var2 = jnp.mean(jnp.square(h1 - mu2), axis=-1, keepdims=True)
    xhat2 = (h1 - mu2) * jax.lax.rsqrt(var2 + EPS)
    z = (jnp.dot(xhat2, wa_ref[:, 4 * H:8 * H], preferred_element_type=jnp.float32)
         + cv_ref[ROW_BFC:ROW_BFC + 1, :])
    z = jax.nn.gelu(z, approximate=True)                      # gelu_pytorch_tanh
    y = (jnp.dot(z, wpr_ref[...], preferred_element_type=jnp.float32)
         + cv_ref[ROW_BO:ROW_BO + 1, H:2 * H])
    h_out_ref[...] = y + h1

    # De-duplicated GQA-expanded K/V cache outputs: one broadcast store per (b, kv head).
    for b in range(B):
        for j in range(KV):
            kb = k_blocks[b * KV + j]
            vb = v_blocks[b * KV + j]
            k_out_ref[b, j * G:(j + 1) * G, :, :] = jnp.broadcast_to(kb[None], (G, S, HD))
            v_out_ref[b, j * G:(j + 1) * G, :, :] = jnp.broadcast_to(vb[None], (G, S, HD))


def _vspec(shape):
    zeros = (0,) * len(shape)
    return pl.BlockSpec(shape, lambda: zeros)


def gpt_crosslayer_block_forward(hidden_states, packed):
    h2d = hidden_states.reshape(B * S, H)                     # fold batch into sublanes (free)
    out2d, key, value = pl.pallas_call(
        _fused_block_kernel,
        out_shape=(
            jax.ShapeDtypeStruct((B * S, H), jnp.float32),
            jax.ShapeDtypeStruct((B, NH, S, HD), jnp.float32),
            jax.ShapeDtypeStruct((B, NH, S, HD), jnp.float32),
        ),
        in_specs=[
            _vspec((B * S, H)),
            _vspec((H, 9 * H)),
            _vspec((INNER, H)),
            _vspec((CV_ROWS, 128)),
        ],
        out_specs=(
            _vspec((B * S, H)),
            _vspec((B, NH, S, HD)),
            _vspec((B, NH, S, HD)),
        ),
    )(h2d, packed["wa"], packed["w_pr"], packed["cv"])
    return out2d.reshape(B, S, H), key, value


# -------------------- one-time parameter folding / packing --------------------
def pack_params(p, cos, sin):
    # Fold LN affines, attention scale and m_residual into the projection weights.
    w_q_f = p["w_q"] * p["ln1_g"].reshape(H, 1) * SCALE
    b_q_f = (p["ln1_b"] @ p["w_q"] + p["b_q"]) * SCALE
    w_kv_f = p["w_kv"] * p["ln_kv_g"].reshape(H, 1)
    b_kv_f = p["ln_kv_b"] @ p["w_kv"] + p["b_kv"]
    w_f = jnp.concatenate([w_q_f, w_kv_f], axis=1)            # (H, 2H)
    b_f = jnp.concatenate([b_q_f, b_kv_f], axis=1)            # (1, 2H)

    # rotate_half as a column permutation/sign matrix over HD-wide head chunks.
    col = jnp.arange(2 * H)
    d = col % HD
    src = (col // HD) * HD + jnp.where(d < HD // 2, d + HD // 2, d - HD // 2)
    sign = jnp.where(d < HD // 2, -1.0, 1.0).astype(jnp.float32)
    rot = jnp.zeros((2 * H, 2 * H), jnp.float32).at[src, col].set(sign)

    w_qkvr = jnp.concatenate([w_f, w_f @ rot], axis=1)        # (H, 4H)
    b_qkvr = jnp.concatenate([b_f, b_f @ rot], axis=1)        # (1, 4H)

    w_fc_f = p["w_fc"] * p["ln2_g"].reshape(H, 1)             # (H, INNER)
    b_fc_f = p["ln2_b"] @ p["w_fc"] + p["b_fc"]               # (1, INNER)
    w_o_f = p["w_o"] * M_RES
    b_o_f = p["b_o"] * M_RES
    w_pr_f = p["w_pr"] * M_RES
    b_pr_f = p["b_pr"] * M_RES

    wa = jnp.concatenate([w_qkvr, w_fc_f, w_o_f], axis=1)     # (H, 9H) = (32, 288)

    # Per-position cos/sin tables over the fused q|kv lane layout (v columns: cos=1, sin=0).
    chunk = col // HD
    is_v = (chunk >= NH) & (chunk % 2 == 1)
    pos = jnp.arange(B * S) % S
    cos_full = jnp.where(is_v[None, :], 1.0, cos[pos][:, d])  # (B*S, 2H)
    sin_full = jnp.where(is_v[None, :], 0.0, sin[pos][:, d])

    # Additive block-diagonal + causal mask for the fused (B*NH*S, B*KV*S) score matrix.
    r = jnp.arange(B * NH * S)
    c = jnp.arange(B * KV * S)
    same = (r[:, None] // (G * S)) == (c[None, :] // S)
    causal = (c[None, :] % S) <= (r[:, None] % S)
    mask = jnp.where(same & causal, 0.0, -1e30).astype(jnp.float32)     # (64, 32)

    cv = jnp.concatenate([
        jnp.concatenate([cos_full, sin_full], axis=1),                          # rows 0:16
        b_qkvr,                                                                 # row 16
        b_fc_f,                                                                 # row 17
        jnp.concatenate([b_o_f, b_pr_f,
                         jnp.zeros((1, 128 - 2 * H), jnp.float32)], axis=1),    # row 18
        jnp.zeros((ROW_MASK - (ROW_BO + 1), 128), jnp.float32),                 # rows 19:24
        jnp.concatenate([mask, jnp.zeros((B * NH * S, 128 - B * KV * S),
                                         jnp.float32)], axis=1),                # rows 24:88
    ], axis=0)                                                                  # (88, 128)

    return {"wa": wa, "w_pr": w_pr_f, "cv": cv}


# ---------------------------- pure-JAX reference ----------------------------
def reference_forward(h, p, cos, sin):
    xn = _layernorm(h, p["ln_kv_g"], p["ln_kv_b"])
    kv = xn @ p["w_kv"] + p["b_kv"]
    kv = kv.reshape(B, S, KV, 2 * HD).transpose(0, 2, 1, 3)
    key, value = kv[..., :HD], kv[..., HD:]
    key = key * cos[None, None] + _rotate_half(key) * sin[None, None]
    key = jnp.repeat(key, NH // KV, axis=1)
    value = jnp.repeat(value, NH // KV, axis=1)

    residual = h
    x = _layernorm(h, p["ln1_g"], p["ln1_b"])
    q = (x @ p["w_q"] + p["b_q"]).reshape(B, S, NH, HD).transpose(0, 2, 1, 3)
    q = q * cos[None, None] + _rotate_half(q) * sin[None, None]
    s = jnp.einsum("bhqd,bhkd->bhqk", q, key) * SCALE
    rows = jnp.arange(S)[:, None]
    cols = jnp.arange(S)[None, :]
    s = jnp.where(cols <= rows, s, -1e30)
    prob = jax.nn.softmax(s, axis=-1)
    ctx = jnp.einsum("bhqk,bhkd->bhqd", prob, value).transpose(0, 2, 1, 3).reshape(B, S, H)
    attn_out = ctx @ p["w_o"] + p["b_o"]
    h = attn_out * M_RES + residual

    residual = h
    x = _layernorm(h, p["ln2_g"], p["ln2_b"])
    z = jax.nn.gelu(x @ p["w_fc"] + p["b_fc"], approximate=True)
    y = z @ p["w_pr"] + p["b_pr"]
    h = y * M_RES + residual
    return h, key, value


def init_params(key):
    ks = jax.random.split(key, 12)
    n = lambda k, s, sc=0.02: sc * jax.random.normal(k, s, jnp.float32)
    return {
        "ln_kv_g": 1.0 + n(ks[0], (1, H), 0.1), "ln_kv_b": n(ks[1], (1, H), 0.1),
        "w_kv": n(ks[2], (H, 2 * KV * HD)),     "b_kv": n(ks[3], (1, 2 * KV * HD)),
        "ln1_g": 1.0 + n(ks[4], (1, H), 0.1),   "ln1_b": n(ks[5], (1, H), 0.1),
        "w_q": n(ks[6], (H, H)),                "b_q": n(ks[7], (1, H)),
        "w_o": n(ks[8], (H, H)),                "b_o": n(ks[9], (1, H)),
        "ln2_g": 1.0 + n(ks[10], (1, H), 0.1),  "ln2_b": n(ks[11], (1, H), 0.1),
        "w_fc": n(jax.random.fold_in(key, 100), (H, INNER)),
        "b_fc": n(jax.random.fold_in(key, 101), (1, INNER)),
        "w_pr": n(jax.random.fold_in(key, 102), (INNER, H)),
        "b_pr": n(jax.random.fold_in(key, 103), (1, H)),
    }


if __name__ == "__main__":
    root = jax.random.PRNGKey(0)
    k_h, k_p = jax.random.split(root)
    hidden_states = jax.random.normal(k_h, (B, S, H), jnp.float32)
    params = init_params(k_p)

    # RoPE cos/sin (theta=10000), shape (S, head_dim)
    pos = jnp.arange(S, dtype=jnp.float32)
    inv_freq = 1.0 / (10000.0 ** (jnp.arange(0, HD, 2, dtype=jnp.float32) / HD))
    freqs = jnp.outer(pos, inv_freq)
    emb = jnp.concatenate([freqs, freqs], axis=-1)
    rope_cos, rope_sin = jnp.cos(emb), jnp.sin(emb)

    packed = pack_params(params, rope_cos, rope_sin)          # one-time fold / pack

    out, key_out, value_out = jax.jit(gpt_crosslayer_block_forward)(hidden_states, packed)
    jax.block_until_ready((out, key_out, value_out))

    ref_out, ref_key, ref_value = reference_forward(hidden_states, params, rope_cos, rope_sin)
    assert out.shape == (B, S, H) and key_out.shape == (B, NH, S, HD)
    assert jnp.allclose(out, ref_out, atol=1e-4, rtol=1e-4)
    assert jnp.allclose(key_out, ref_key, atol=1e-4, rtol=1e-4)
    assert jnp.allclose(value_out, ref_value, atol=1e-4, rtol=1e-4)
    print("KERNEL_OK")

    # TODO(synk): past_key_values cache update, flash_attention_2 / padding-free paths,
    # and the non-owner-layer branch (kv passed in) are not implemented (config fixes
    # sdpa + rope + owner layer, matching the exercised PyTorch path).
</pallas_src>

<mosaic_0001>
module attributes {stable_mosaic.version = 11 : i64} {
  func.func @_fused_block_kernel(%arg0: memref<16x32xf32, #tpu.memory_space<vmem>>, %arg1: memref<32x288xf32, #tpu.memory_space<vmem>>, %arg2: memref<128x32xf32, #tpu.memory_space<vmem>>, %arg3: memref<88x128xf32, #tpu.memory_space<vmem>>, %arg4: memref<16x32xf32, #tpu.memory_space<vmem>>, %arg5: memref<2x4x8x8xf32, #tpu.memory_space<vmem>>, %arg6: memref<2x4x8x8xf32, #tpu.memory_space<vmem>>) attributes {dimension_semantics = [], scalar_prefetch = 0 : i64, scratch_operands = 0 : i64, tpu.core_type = #tpu.core_type<tc>} {
    %c0 = arith.constant 0 : index
    %c0_0 = arith.constant 0 : index
    %0 = vector.load %arg0[%c0, %c0_0] : memref<16x32xf32, #tpu.memory_space<vmem>>, vector<16x32xf32>
    %cst = arith.constant dense<0.000000e+00> : vector<16xf32>
    %1 = vector.multi_reduction <add>, %0, %cst [1] : vector<16x32xf32> to vector<16xf32>
    %2 = vector.shape_cast %1 : vector<16xf32> to vector<16x1xf32>
    %cst_1 = arith.constant 3.200000e+01 : f32
    %3 = vector.broadcast %cst_1 : f32 to vector<16x1xf32>
    %4 = arith.divf %2, %3 : vector<16x1xf32>
    %5 = vector.broadcast %4 : vector<16x1xf32> to vector<16x32xf32>
    %6 = arith.subf %0, %5 : vector<16x32xf32>
    %7 = arith.mulf %6, %6 : vector<16x32xf32>
    %cst_2 = arith.constant dense<0.000000e+00> : vector<16xf32>
    %8 = vector.multi_reduction <add>, %7, %cst_2 [1] : vector<16x32xf32> to vector<16xf32>
    %9 = vector.shape_cast %8 : vector<16xf32> to vector<16x1xf32>
    %cst_3 = arith.constant 3.200000e+01 : f32
    %10 = vector.broadcast %cst_3 : f32 to vector<16x1xf32>
    %11 = arith.divf %9, %10 : vector<16x1xf32>
    %12 = vector.broadcast %4 : vector<16x1xf32> to vector<16x32xf32>
    %13 = arith.subf %0, %12 : vector<16x32xf32>
    %cst_4 = arith.constant 9.99999974E-6 : f32
    %14 = vector.broadcast %cst_4 : f32 to vector<16x1xf32>
    %15 = arith.addf %11, %14 : vector<16x1xf32>
    %16 = math.rsqrt %15 : vector<16x1xf32>
    %17 = vector.broadcast %16 : vector<16x1xf32> to vector<16x32xf32>
    %18 = arith.mulf %13, %17 : vector<16x32xf32>
    %c0_5 = arith.constant 0 : index
    %c0_6 = arith.constant 0 : index
    %19 = vector.load %arg1[%c0_5, %c0_6] : memref<32x288xf32, #tpu.memory_space<vmem>>, vector<32x128xf32>
    %cst_7 = arith.constant dense<0.000000e+00> : vector<16x128xf32>
    %20 = tpu.matmul %18, %19, %cst_7 {dimension_numbers = #tpu.dot_dimension_numbers<[1], [0], [0], [1], [0, 0, 1, 1], [], []>} : vector<16x32xf32>, vector<32x128xf32>, vector<16x128xf32> -> vector<16x128xf32>
    %c16 = arith.constant 16 : index
    %c0_8 = arith.constant 0 : index
    %21 = vector.load %arg3[%c16, %c0_8] : memref<88x128xf32, #tpu.memory_space<vmem>>, vector<1x128xf32>
    %22 = vector.broadcast %21 : vector<1x128xf32> to vector<16x128xf32>
    %23 = arith.addf %20, %22 : vector<16x128xf32>
    %c0_9 = arith.constant 0 : index
    %c0_10 = arith.constant 0 : index
    %24 = vector.load %arg3[%c0_9, %c0_10] : memref<88x128xf32, #tpu.memory_space<vmem>>, vector<16x64xf32>
    %c0_11 = arith.constant 0 : index
    %c64 = arith.constant 64 : index
    %25 = vector.load %arg3[%c0_11, %c64] : memref<88x128xf32, #tpu.memory_space<vmem>>, vector<16x64xf32>
    %26 = vector.extract_strided_slice %23 {offsets = [0, 0], sizes = [16, 64], strides = [1, 1]} : vector<16x128xf32> to vector<16x64xf32>
    %27 = arith.mulf %26, %24 : vector<16x64xf32>
    %28 = vector.extract_strided_slice %23 {offsets = [0, 64], sizes = [16, 64], strides = [1, 1]} : vector<16x128xf32> to vector<16x64xf32>
    %29 = arith.mulf %28, %25 : vector<16x64xf32>
    %30 = arith.addf %27, %29 : vector<16x64xf32>
    %31 = vector.extract_strided_slice %30 {offsets = [0, 0], sizes = [8, 8], strides = [1, 1]} : vector<16x64xf32> to vector<8x8xf32>
    %32 = vector.extract_strided_slice %30 {offsets = [0, 8], sizes = [8, 8], strides = [1, 1]} : vector<16x64xf32> to vector<8x8xf32>
    %33 = vector.extract_strided_slice %30 {offsets = [0, 16], sizes = [8, 8], strides = [1, 1]} : vector<16x64xf32> to vector<8x8xf32>
    %34 = vector.extract_strided_slice %30 {offsets = [0, 24], sizes = [8, 8], strides = [1, 1]} : vector<16x64xf32> to vector<8x8xf32>
    %35 = vector.extract_strided_slice %30 {offsets = [8, 0], sizes = [8, 8], strides = [1, 1]} : vector<16x64xf32> to vector<8x8xf32>
    %36 = vector.extract_strided_slice %30 {offsets = [8, 8], sizes = [8, 8], strides = [1, 1]} : vector<16x64xf32> to vector<8x8xf32>
    %37 = vector.extract_strided_slice %30 {offsets = [8, 16], sizes = [8, 8], strides = [1, 1]} : vector<16x64xf32> to vector<8x8xf32>
    %38 = vector.extract_strided_slice %30 {offsets = [8, 24], sizes = [8, 8], strides = [1, 1]} : vector<16x64xf32> to vector<8x8xf32>
    %39 = vector.extract_strided_slice %30 {offsets = [0, 32], sizes = [8, 8], strides = [1, 1]} : vector<16x64xf32> to vector<8x8xf32>
    %40 = vector.extract_strided_slice %30 {offsets = [0, 48], sizes = [8, 8], strides = [1, 1]} : vector<16x64xf32> to vector<8x8xf32>
    %41 = vector.extract_strided_slice %30 {offsets = [8, 32], sizes = [8, 8], strides = [1, 1]} : vector<16x64xf32> to vector<8x8xf32>
    %42 = vector.extract_strided_slice %30 {offsets = [8, 48], sizes = [8, 8], strides = [1, 1]} : vector<16x64xf32> to vector<8x8xf32>
    %43 = vector.extract_strided_slice %30 {offsets = [0, 40], sizes = [8, 8], strides = [1, 1]} : vector<16x64xf32> to vector<8x8xf32>
    %44 = vector.extract_strided_slice %30 {offsets = [0, 56], sizes = [8, 8], strides = [1, 1]} : vector<16x64xf32> to vector<8x8xf32>
    %45 = vector.extract_strided_slice %30 {offsets = [8, 40], sizes = [8, 8], strides = [1, 1]} : vector<16x64xf32> to vector<8x8xf32>
    %46 = vector.extract_strided_slice %30 {offsets = [8, 56], sizes = [8, 8], strides = [1, 1]} : vector<16x64xf32> to vector<8x8xf32>
    %47 = tpu.concatenate %31, %32, %33, %34, %35, %36, %37, %38 in 0 : vector<8x8xf32>, vector<8x8xf32>, vector<8x8xf32>, vector<8x8xf32>, vector<8x8xf32>, vector<8x8xf32>, vector<8x8xf32>, vector<8x8xf32> -> vector<64x8xf32>
    %48 = tpu.concatenate %39, %40, %41, %42 in 0 : vector<8x8xf32>, vector<8x8xf32>, vector<8x8xf32>, vector<8x8xf32> -> vector<32x8xf32>
    %49 = tpu.concatenate %43, %44, %45, %46 in 0 : vector<8x8xf32>, vector<8x8xf32>, vector<8x8xf32>, vector<8x8xf32> -> vector<32x8xf32>
    %cst_12 = arith.constant dense<0.000000e+00> : vector<64x32xf32>
    %50 = tpu.matmul %47, %48, %cst_12 {dimension_numbers = #tpu.dot_dimension_numbers<[1], [1], [0], [0], [0, 0, 1, 0], [], []>} : vector<64x8xf32>, vector<32x8xf32>, vector<64x32xf32> -> vector<64x32xf32>
    %c24 = arith.constant 24 : index
    %c0_13 = arith.constant 0 : index
    %51 = vector.load %arg3[%c24, %c0_13] : memref<88x128xf32, #tpu.memory_space<vmem>>, vector<64x32xf32>
    %52 = arith.addf %50, %51 : vector<64x32xf32>
    %cst_14 = arith.constant dense<0xFF800000> : vector<64xf32>
    %53 = vector.multi_reduction <maximumf>, %52, %cst_14 [1] : vector<64x32xf32> to vector<64xf32>
    %54 = vector.shape_cast %53 : vector<64xf32> to vector<64x1xf32>
    %55 = vector.broadcast %54 : vector<64x1xf32> to vector<64x32xf32>
    %56 = arith.subf %52, %55 : vector<64x32xf32>
    %57 = math.exp %56 : vector<64x32xf32>
    %cst_15 = arith.constant dense<0.000000e+00> : vector<64xf32>
    %58 = vector.multi_reduction <add>, %57, %cst_15 [1] : vector<64x32xf32> to vector<64xf32>
    %59 = vector.shape_cast %58 : vector<64xf32> to vector<64x1xf32>
    %60 = tpu.reciprocal %59 : vector<64x1xf32> -> vector<64x1xf32>
    %61 = vector.broadcast %60 : vector<64x1xf32> to vector<64x32xf32>
    %62 = arith.mulf %57, %61 : vector<64x32xf32>
    %cst_16 = arith.constant dense<0.000000e+00> : vector<64x8xf32>
    %63 = tpu.matmul %62, %49, %cst_16 {dimension_numbers = #tpu.dot_dimension_numbers<[1], [0], [0], [1], [0, 0, 1, 1], [], []>} : vector<64x32xf32>, vector<32x8xf32>, vector<64x8xf32> -> vector<64x8xf32>
    %64 = vector.extract_strided_slice %63 {offsets = [0, 0], sizes = [8, 8], strides = [1, 1]} : vector<64x8xf32> to vector<8x8xf32>
    %65 = vector.extract_strided_slice %63 {offsets = [8, 0], sizes = [8, 8], strides = [1, 1]} : vector<64x8xf32> to vector<8x8xf32>
    %66 = vector.extract_strided_slice %63 {offsets = [16, 0], sizes = [8, 8], strides = [1, 1]} : vector<64x8xf32> to vector<8x8xf32>
    %67 = vector.extract_strided_slice %63 {offsets = [24, 0], sizes = [8, 8], strides = [1, 1]} : vector<64x8xf32> to vector<8x8xf32>
    %68 = tpu.concatenate %64, %65, %66, %67 in 1 : vector<8x8xf32>, vector<8x8xf32>, vector<8x8xf32>, vector<8x8xf32> -> vector<8x32xf32>
    %69 = vector.extract_strided_slice %63 {offsets = [32, 0], sizes = [8, 8], strides = [1, 1]} : vector<64x8xf32> to vector<8x8xf32>
    %70 = vector.extract_strided_slice %63 {offsets = [40, 0], sizes = [8, 8], strides = [1, 1]} : vector<64x8xf32> to vector<8x8xf32>
    %71 = vector.extract_strided_slice %63 {offsets = [48, 0], sizes = [8, 8], strides = [1, 1]} : vector<64x8xf32> to vector<8x8xf32>
    %72 = vector.extract_strided_slice %63 {offsets = [56, 0], sizes = [8, 8], strides = [1, 1]} : vector<64x8xf32> to vector<8x8xf32>
    %73 = tpu.concatenate %69, %70, %71, %72 in 1 : vector<8x8xf32>, vector<8x8xf32>, vector<8x8xf32>, vector<8x8xf32> -> vector<8x32xf32>
    %74 = tpu.concatenate %68, %73 in 0 : vector<8x32xf32>, vector<8x32xf32> -> vector<16x32xf32>
    %c0_17 = arith.constant 0 : index
    %c256 = arith.constant 256 : index
    %75 = vector.load %arg1[%c0_17, %c256] : memref<32x288xf32, #tpu.memory_space<vmem>>, vector<32x32xf32>
    %cst_18 = arith.constant dense<0.000000e+00> : vector<16x32xf32>
    %76 = tpu.matmul %74, %75, %cst_18 {dimension_numbers = #tpu.dot_dimension_numbers<[1], [0], [0], [1], [0, 0, 1, 1], [], []>} : vector<16x32xf32>, vector<32x32xf32>, vector<16x32xf32> -> vector<16x32xf32>
    %c18 = arith.constant 18 : index
    %c0_19 = arith.constant 0 : index
    %77 = vector.load %arg3[%c18, %c0_19] : memref<88x128xf32, #tpu.memory_space<vmem>>, vector<1x32xf32>
    %78 = vector.broadcast %77 : vector<1x32xf32> to vector<16x32xf32>
    %79 = arith.addf %76, %78 : vector<16x32xf32>
    %80 = arith.addf %79, %0 : vector<16x32xf32>
    %cst_20 = arith.constant dense<0.000000e+00> : vector<16xf32>
    %81 = vector.multi_reduction <add>, %80, %cst_20 [1] : vector<16x32xf32> to vector<16xf32>
    %82 = vector.shape_cast %81 : vector<16xf32> to vector<16x1xf32>
    %cst_21 = arith.constant 3.200000e+01 : f32
    %83 = vector.broadcast %cst_21 : f32 to vector<16x1xf32>
    %84 = arith.divf %82, %83 : vector<16x1xf32>
    %85 = vector.broadcast %84 : vector<16x1xf32> to vector<16x32xf32>
    %86 = arith.subf %80, %85 : vector<16x32xf32>
    %87 = arith.mulf %86, %86 : vector<16x32xf32>
    %cst_22 = arith.constant dense<0.000000e+00> : vector<16xf32>
    %88 = vector.multi_reduction <add>, %87, %cst_22 [1] : vector<16x32xf32> to vector<16xf32>
    %89 = vector.shape_cast %88 : vector<16xf32> to vector<16x1xf32>
    %cst_23 = arith.constant 3.200000e+01 : f32
    %90 = vector.broadcast %cst_23 : f32 to vector<16x1xf32>
    %91 = arith.divf %89, %90 : vector<16x1xf32>
    %92 = vector.broadcast %84 : vector<16x1xf32> to vector<16x32xf32>
    %93 = arith.subf %80, %92 : vector<16x32xf32>
    %cst_24 = arith.constant 9.99999974E-6 : f32
    %94 = vector.broadcast %cst_24 : f32 to vector<16x1xf32>
    %95 = arith.addf %91, %94 : vector<16x1xf32>
    %96 = math.rsqrt %95 : vector<16x1xf32>
    %97 = vector.broadcast %96 : vector<16x1xf32> to vector<16x32xf32>
    %98 = arith.mulf %93, %97 : vector<16x32xf32>
    %c0_25 = arith.constant 0 : index
    %c128 = arith.constant 128 : index
    %99 = vector.load %arg1[%c0_25, %c128] : memref<32x288xf32, #tpu.memory_space<vmem>>, vector<32x128xf32>
    %cst_26 = arith.constant dense<0.000000e+00> : vector<16x128xf32>
    %100 = tpu.matmul %98, %99, %cst_26 {dimension_numbers = #tpu.dot_dimension_numbers<[1], [0], [0], [1], [0, 0, 1, 1], [], []>} : vector<16x32xf32>, vector<32x128xf32>, vector<16x128xf32> -> vector<16x128xf32>
    %c17 = arith.constant 17 : index
    %c0_27 = arith.constant 0 : index
    %101 = vector.load %arg3[%c17, %c0_27] : memref<88x128xf32, #tpu.memory_space<vmem>>, vector<1x128xf32>
    %102 = vector.broadcast %101 : vector<1x128xf32> to vector<16x128xf32>
    %103 = arith.addf %100, %102 : vector<16x128xf32>
    %104 = arith.mulf %103, %103 : vector<16x128xf32>
    %105 = arith.mulf %103, %104 : vector<16x128xf32>
    %cst_28 = arith.constant 4.471500e-02 : f32
    %106 = vector.broadcast %cst_28 : f32 to vector<16x128xf32>
    %107 = arith.mulf %106, %105 : vector<16x128xf32>
    %108 = arith.addf %103, %107 : vector<16x128xf32>
    %cst_29 = arith.constant 0.797884583 : f32
    %109 = vector.broadcast %cst_29 : f32 to vector<16x128xf32>
    %110 = arith.mulf %109, %108 : vector<16x128xf32>
    %111 = math.tanh %110 : vector<16x128xf32>
    %cst_30 = arith.constant 1.000000e+00 : f32
    %112 = vector.broadcast %cst_30 : f32 to vector<16x128xf32>
    %113 = arith.addf %112, %111 : vector<16x128xf32>
    %cst_31 = arith.constant 5.000000e-01 : f32
    %114 = vector.broadcast %cst_31 : f32 to vector<16x128xf32>
    %115 = arith.mulf %114, %113 : vector<16x128xf32>
    %116 = arith.mulf %103, %115 : vector<16x128xf32>
    %c0_32 = arith.constant 0 : index
    %c0_33 = arith.constant 0 : index
    %117 = vector.load %arg2[%c0_32, %c0_33] : memref<128x32xf32, #tpu.memory_space<vmem>>, vector<128x32xf32>
    %cst_34 = arith.constant dense<0.000000e+00> : vector<16x32xf32>
    %118 = tpu.matmul %116, %117, %cst_34 {dimension_numbers = #tpu.dot_dimension_numbers<[1], [0], [0], [1], [0, 0, 1, 1], [], []>} : vector<16x128xf32>, vector<128x32xf32>, vector<16x32xf32> -> vector<16x32xf32>
    %c18_35 = arith.constant 18 : index
    %c32 = arith.constant 32 : index
    %119 = vector.load %arg3[%c18_35, %c32] : memref<88x128xf32, #tpu.memory_space<vmem>>, vector<1x32xf32>
    %120 = vector.broadcast %119 : vector<1x32xf32> to vector<16x32xf32>
    %121 = arith.addf %118, %120 : vector<16x32xf32>
    %122 = arith.addf %121, %80 : vector<16x32xf32>
    %c0_36 = arith.constant 0 : index
    %c0_37 = arith.constant 0 : index
    %123 = vector.load %arg4[%c0_36, %c0_37] : memref<16x32xf32, #tpu.memory_space<vmem>>, vector<16x32xf32>
    tpu.vector_store %arg4[%c0_36, %c0_37], %122 {strides = array<i32>} : memref<16x32xf32, #tpu.memory_space<vmem>>, vector<16x32xf32>,
    %124 = vector.shape_cast %39 : vector<8x8xf32> to vector<1x8x8xf32>
    %125 = vector.shape_cast %124 : vector<1x8x8xf32> to vector<1x8x8xf32>
    %126 = vector.broadcast %125 : vector<1x8x8xf32> to vector<2x8x8xf32>
    %c0_38 = arith.constant 0 : index
    %c0_39 = arith.constant 0 : index
    %c0_40 = arith.constant 0 : index
    %c0_41 = arith.constant 0 : index
    %127 = vector.load %arg5[%c0_38, %c0_39, %c0_40, %c0_41] : memref<2x4x8x8xf32, #tpu.memory_space<vmem>>, vector<1x2x8x8xf32>
    %128 = vector.shape_cast %127 : vector<1x2x8x8xf32> to vector<2x8x8xf32>
    %129 = vector.shape_cast %126 : vector<2x8x8xf32> to vector<1x2x8x8xf32>
    tpu.vector_store %arg5[%c0_38, %c0_39, %c0_40, %c0_41], %129 {strides = array<i32>} : memref<2x4x8x8xf32, #tpu.memory_space<vmem>>, vector<1x2x8x8xf32>,
    %130 = vector.shape_cast %43 : vector<8x8xf32> to vector<1x8x8xf32>
    %131 = vector.shape_cast %130 : vector<1x8x8xf32> to vector<1x8x8xf32>
    %132 = vector.broadcast %131 : vector<1x8x8xf32> to vector<2x8x8xf32>
    %c0_42 = arith.constant 0 : index
    %c0_43 = arith.constant 0 : index
    %c0_44 = arith.constant 0 : index
    %c0_45 = arith.constant 0 : index
    %133 = vector.load %arg6[%c0_42, %c0_43, %c0_44, %c0_45] : memref<2x4x8x8xf32, #tpu.memory_space<vmem>>, vector<1x2x8x8xf32>
    %134 = vector.shape_cast %133 : vector<1x2x8x8xf32> to vector<2x8x8xf32>
    %135 = vector.shape_cast %132 : vector<2x8x8xf32> to vector<1x2x8x8xf32>
    tpu.vector_store %arg6[%c0_42, %c0_43, %c0_44, %c0_45], %135 {strides = array<i32>} : memref<2x4x8x8xf32, #tpu.memory_space<vmem>>, vector<1x2x8x8xf32>,
    %136 = vector.shape_cast %40 : vector<8x8xf32> to vector<1x8x8xf32>
    %137 = vector.shape_cast %136 : vector<1x8x8xf32> to vector<1x8x8xf32>
    %138 = vector.broadcast %137 : vector<1x8x8xf32> to vector<2x8x8xf32>
    %c0_46 = arith.constant 0 : index
    %c2 = arith.constant 2 : index
    %c0_47 = arith.constant 0 : index
    %c0_48 = arith.constant 0 : index
    %139 = vector.load %arg5[%c0_46, %c2, %c0_47, %c0_48] : memref<2x4x8x8xf32, #tpu.memory_space<vmem>>, vector<1x2x8x8xf32>
    %140 = vector.shape_cast %139 : vector<1x2x8x8xf32> to vector<2x8x8xf32>
    %141 = vector.shape_cast %138 : vector<2x8x8xf32> to vector<1x2x8x8xf32>
    tpu.vector_store %arg5[%c0_46, %c2, %c0_47, %c0_48], %141 {strides = array<i32>} : memref<2x4x8x8xf32, #tpu.memory_space<vmem>>, vector<1x2x8x8xf32>,
    %142 = vector.shape_cast %44 : vector<8x8xf32> to vector<1x8x8xf32>
    %143 = vector.shape_cast %142 : vector<1x8x8xf32> to vector<1x8x8xf32>
    %144 = vector.broadcast %143 : vector<1x8x8xf32> to vector<2x8x8xf32>
    %c0_49 = arith.constant 0 : index
    %c2_50 = arith.constant 2 : index
    %c0_51 = arith.constant 0 : index
    %c0_52 = arith.constant 0 : index
    %145 = vector.load %arg6[%c0_49, %c2_50, %c0_51, %c0_52] : memref<2x4x8x8xf32, #tpu.memory_space<vmem>>, vector<1x2x8x8xf32>
    %146 = vector.shape_cast %145 : vector<1x2x8x8xf32> to vector<2x8x8xf32>
    %147 = vector.shape_cast %144 : vector<2x8x8xf32> to vector<1x2x8x8xf32>
    tpu.vector_store %arg6[%c0_49, %c2_50, %c0_51, %c0_52], %147 {strides = array<i32>} : memref<2x4x8x8xf32, #tpu.memory_space<vmem>>, vector<1x2x8x8xf32>,
    %148 = vector.shape_cast %41 : vector<8x8xf32> to vector<1x8x8xf32>
    %149 = vector.shape_cast %148 : vector<1x8x8xf32> to vector<1x8x8xf32>
    %150 = vector.broadcast %149 : vector<1x8x8xf32> to vector<2x8x8xf32>
    %c1 = arith.constant 1 : index
    %c0_53 = arith.constant 0 : index
    %c0_54 = arith.constant 0 : index
    %c0_55 = arith.constant 0 : index
    %151 = vector.load %arg5[%c1, %c0_53, %c0_54, %c0_55] : memref<2x4x8x8xf32, #tpu.memory_space<vmem>>, vector<1x2x8x8xf32>
    %152 = vector.shape_cast %151 : vector<1x2x8x8xf32> to vector<2x8x8xf32>
    %153 = vector.shape_cast %150 : vector<2x8x8xf32> to vector<1x2x8x8xf32>
    tpu.vector_store %arg5[%c1, %c0_53, %c0_54, %c0_55], %153 {strides = array<i32>} : memref<2x4x8x8xf32, #tpu.memory_space<vmem>>, vector<1x2x8x8xf32>,
    %154 = vector.shape_cast %45 : vector<8x8xf32> to vector<1x8x8xf32>
    %155 = vector.shape_cast %154 : vector<1x8x8xf32> to vector<1x8x8xf32>
    %156 = vector.broadcast %155 : vector<1x8x8xf32> to vector<2x8x8xf32>
    %c1_56 = arith.constant 1 : index
    %c0_57 = arith.constant 0 : index
    %c0_58 = arith.constant 0 : index
    %c0_59 = arith.constant 0 : index
    %157 = vector.load %arg6[%c1_56, %c0_57, %c0_58, %c0_59] : memref<2x4x8x8xf32, #tpu.memory_space<vmem>>, vector<1x2x8x8xf32>
    %158 = vector.shape_cast %157 : vector<1x2x8x8xf32> to vector<2x8x8xf32>
    %159 = vector.shape_cast %156 : vector<2x8x8xf32> to vector<1x2x8x8xf32>
    tpu.vector_store %arg6[%c1_56, %c0_57, %c0_58, %c0_59], %159 {strides = array<i32>} : memref<2x4x8x8xf32, #tpu.memory_space<vmem>>, vector<1x2x8x8xf32>,
    %160 = vector.shape_cast %42 : vector<8x8xf32> to vector<1x8x8xf32>
    %161 = vector.shape_cast %160 : vector<1x8x8xf32> to vector<1x8x8xf32>
    %162 = vector.broadcast %161 : vector<1x8x8xf32> to vector<2x8x8xf32>
    %c1_60 = arith.constant 1 : index
    %c2_61 = arith.constant 2 : index
    %c0_62 = arith.constant 0 : index
    %c0_63 = arith.constant 0 : index
    %163 = vector.load %arg5[%c1_60, %c2_61, %c0_62, %c0_63] : memref<2x4x8x8xf32, #tpu.memory_space<vmem>>, vector<1x2x8x8xf32>
    %164 = vector.shape_cast %163 : vector<1x2x8x8xf32> to vector<2x8x8xf32>
    %165 = vector.shape_cast %162 : vector<2x8x8xf32> to vector<1x2x8x8xf32>
    tpu.vector_store %arg5[%c1_60, %c2_61, %c0_62, %c0_63], %165 {strides = array<i32>} : memref<2x4x8x8xf32, #tpu.memory_space<vmem>>, vector<1x2x8x8xf32>,
    %166 = vector.shape_cast %46 : vector<8x8xf32> to vector<1x8x8xf32>
    %167 = vector.shape_cast %166 : vector<1x8x8xf32> to vector<1x8x8xf32>
    %168 = vector.broadcast %167 : vector<1x8x8xf32> to vector<2x8x8xf32>
    %c1_64 = arith.constant 1 : index
    %c2_65 = arith.constant 2 : index
    %c0_66 = arith.constant 0 : index
    %c0_67 = arith.constant 0 : index
    %169 = vector.load %arg6[%c1_64, %c2_65, %c0_66, %c0_67] : memref<2x4x8x8xf32, #tpu.memory_space<vmem>>, vector<1x2x8x8xf32>
    %170 = vector.shape_cast %169 : vector<1x2x8x8xf32> to vector<2x8x8xf32>
    %171 = vector.shape_cast %168 : vector<2x8x8xf32> to vector<1x2x8x8xf32>
    tpu.vector_store %arg6[%c1_64, %c2_65, %c0_66, %c0_67], %171 {strides = array<i32>} : memref<2x4x8x8xf32, #tpu.memory_space<vmem>>, vector<1x2x8x8xf32>,
    return
  }
}

</mosaic_0001>

<llo_original>
// kernel: gpt_crosslayer_block_forward.1
$region0: #{gpt_crosslayer_block_forward.1}
  #allocation0 [shape = 'u32[]', space=smem, size = 0x4, offset = 0x4, fixed_abs, tag = 'smem constant byte address 0x4 - core index']
  #allocation1 [shape = 'u32[144,128]{1,0:T(1,128)}', space=vmem, size = 0x12000, scoped, tag = 'internal scratch']
  %s0 = inlined_call_operand.vmem [shape: f32[16,32], index: 0, kind: input, shape index: {}]
  %s1 = inlined_call_operand.vmem [shape: f32[32,288], index: 1, kind: input, shape index: {}]
  %s2 = inlined_call_operand.vmem [shape: f32[128,32], index: 2, kind: input, shape index: {}]
  %s3 = inlined_call_operand.hbm [shape: f32[88,128], index: 3, kind: input, shape index: {}]
  %s4 = inlined_call_operand.hbm [shape: f32[16,32], index: 4, kind: output, shape index: {0}]
  %s5 = inlined_call_operand.hbm [shape: f32[2,4,8,8], index: 5, kind: output, shape index: {1}]
  %s6 = inlined_call_operand.hbm [shape: f32[2,4,8,8], index: 6, kind: output, shape index: {2}]
  %7 = xla_tuple %s4, %s5, %s6
  %s8 = sld [smem:[#allocation0]]
  $region46: #{gpt_crosslayer_block_forward.1} parent=0
    _
  %s10 = ssub.s32 1, %s8
  %s11 = scalar_select 0, %s10, %s8
  $region1: #{gpt_crosslayer_block_forward.1} parent=0
    #allocation2 [shape = 'u8[45056]{0}', space=vmem, size = 0xb000, scoped, tag = 'input window, operand 3, single buffered']
    #allocation3 [shape = 's32[1]{0}', space=sflag, size = 0x4, scoped, tag = 'scoped memory for gpt_crosslayer_block_forward.1']
    #allocation4 [shape = 's32[1]{0}', space=sflag, size = 0x4, scoped, tag = 'scoped memory for gpt_crosslayer_block_forward.1']
    #allocation5 [shape = 'u8[8192]{0}', space=vmem, size = 0x2000, scoped, tag = 'output window, operand 0, single buffered']
    #allocation6 [shape = 'u8[32768]{0}', space=vmem, size = 0x8000, scoped, tag = 'output window, operand 1, single buffered']
    #allocation7 [shape = 's32[1]{0}', space=sflag, size = 0x4, scoped, tag = 'scoped memory for gpt_crosslayer_block_forward.1']
    #allocation8 [shape = 'u8[32768]{0}', space=vmem, size = 0x8000, scoped, tag = 'output window, operand 2, single buffered']
    %12 = vsyncpa [#allocation3], 0
    %13 = vsyncpa [#allocation4], 0
    %14 = vsyncpa [#allocation7], 0
    // Predicated region
    $region2: #{gpt_crosslayer_block_forward.1} parent=1 // pred_check
      _
    $region3: #{gpt_crosslayer_block_forward.1} parent=1 // pred_check_branch
      %16 = sbr.rel (0) target = $region5
    $region4: #{gpt_crosslayer_block_forward.1} parent=1 // pred_region
      _
    $region5: #{gpt_crosslayer_block_forward.1} parent=1 // pred_fallthru
      _
    // Predicated region
    $region6: #{gpt_crosslayer_block_forward.1} parent=1 // pred_check
      _
    $region7: #{gpt_crosslayer_block_forward.1} parent=1 // pred_check_branch
      %18 = sbr.rel (0) target = $region9
    $region8: #{gpt_crosslayer_block_forward.1} parent=1 // pred_region
      _
    $region9: #{gpt_crosslayer_block_forward.1} parent=1 // pred_fallthru
      _
    // Predicated region
    $region10: #{gpt_crosslayer_block_forward.1} parent=1 // pred_check
      _
    $region11: #{gpt_crosslayer_block_forward.1} parent=1 // pred_check_branch
      %20 = sbr.rel (0) target = $region13
    $region12: #{gpt_crosslayer_block_forward.1} parent=1 // pred_region
      _
    $region13: #{gpt_crosslayer_block_forward.1} parent=1 // pred_fallthru
      _
    // Predicated region
    $region14: #{gpt_crosslayer_block_forward.1} parent=1 // pred_check
      _
    $region15: #{gpt_crosslayer_block_forward.1} parent=1 // pred_check_branch
      %22 = sbr.rel (0) target = $region17
    $region16: #{gpt_crosslayer_block_forward.1} parent=1 // pred_region
      %s24 = ssub.s32 1408, 1408
      %25 = vsyncadd [#allocation3], %s24
      %s26 = sshll.u32 [#allocation2], 4
      %s27 = int_to_ptr.vmem [resolvable:$true] %s26
      %32 = dma.hbm_to_vmem [thread:$0]  %s3, 1408, %s27, [#allocation3], 128, 128, 8
    $region17: #{gpt_crosslayer_block_forward.1} parent=1 // pred_fallthru
      _
    // Predicated region
    $region18: #{gpt_crosslayer_block_forward.1} parent=1 // pred_check
      _
    $region19: #{gpt_crosslayer_block_forward.1} parent=1 // pred_check_branch
      %34 = sbr.rel (0) target = $region21
    $region20: #{gpt_crosslayer_block_forward.1} parent=1 // pred_region
      %35 = dma.done [#allocation3], 1408
    $region21: #{gpt_crosslayer_block_forward.1} parent=1 // pred_fallthru
      _
    %v36 = vld [vmem:[%s0] sm:$0xff]
    %v37 = vld [vmem:[%s0 + $0x8] sm:$0xff]
    %vm38 = vcmask 261120
    %v39 = vsel %vm38, %v36, 0.0
    %40 = vadd.xlane.f32.xlu0 %v39
    %v41 = vpop.xlane.xlu0 %40
    %v42 = vsel %vm38, %v37, 0.0
    %43 = vadd.xlane.f32.xlu0 %v42
    %v44 = vpop.xlane.xlu0 %43
    %v45 = vrcp.pop 32.0
    %v46 = vmul.f32 %v41, %v45
    %v47 = vmul.f32 %v44, %v45
    %v48 = vsub.f32 %v36, %v46
    %v49 = vsub.f32 %v37, %v47
    %v50 = vmul.f32 %v48, %v48
    %v51 = vmul.f32 %v49, %v49
    %v52 = vsel %vm38, %v50, 0.0
    %53 = vadd.xlane.f32.xlu0 %v52
    %v54 = vpop.xlane.xlu0 %53
    %v55 = vsel %vm38, %v51, 0.0
    %56 = vadd.xlane.f32.xlu0 %v55
    %v57 = vpop.xlane.xlu0 %56
    %v58 = vmul.f32 %v54, %v45
    %v59 = vmul.f32 %v57, %v45
    %v60 = vadd.f32 %v58, 1e-05
    %v61 = vadd.f32 %v59, 1e-05
    %v62 = vrsqrt.pop %v60
    %v63 = vrsqrt.pop %v61
    %v64 = vmul.f32 %v48, %v62
    %v65 = vmul.f32 %v49, %v63
    %v66 = vld [vmem:[%s1] sm:$0xff]
    %v67 = vld [vmem:[%s1 + $0x18] sm:$0xff]
    %v68 = vld [vmem:[%s1 + $0x30] sm:$0xff]
    %v69 = vld [vmem:[%s1 + $0x48] sm:$0xff]
    %v70 = vld [vmem:[#allocation2 + $0x10] sm:$0x1]
    %v71 = vlaneseq
    %v72 = vshrl.u32 %v71, 7
    %v73 = vsub.s32 0, %v72
    %v74 = vrot.slane %v70, %v73
    %v76 = vsel %vm38, %v64, 0
    %v79 = vsel %vm38, %v65, 0
    %81 = vmatprep.subr.mxu0 0.0
    %82 = vmatpush1.msra.mxu0 0.0
    %83 = vmatprep.subr.mxu0 0.0
    %84 = vmatpush1.msra.mxu0 0.0
    %85 = vmatprep.subr.mxu0 0.0
    %86 = vmatpush1.msra.mxu0 0.0
    %87 = vmatprep.subr.mxu0 0.0
    %88 = vmatpush1.msra.mxu0 0.0
    %89 = vmatprep.subr.mxu0 0.0
    %90 = vmatpush1.msra.mxu0 0.0
    %91 = vmatprep.subr.mxu0 0.0
    %92 = vmatpush1.msra.mxu0 0.0
    %93 = vmatprep.subr.mxu0 0.0
    %94 = vmatpush1.msra.mxu0 0.0
    %95 = vmatprep.subr.mxu0 0.0
    %96 = vmatpush1.msra.mxu0 0.0
    %97 = vmatprep.subr.mxu0 0.0
    %98 = vmatpush1.msra.mxu0 0.0
    %99 = vmatprep.subr.mxu0 0.0
    %100 = vmatpush1.msra.mxu0 0.0
    %101 = vmatprep.subr.mxu0 0.0
    %102 = vmatpush1.msra.mxu0 0.0
    %103 = vmatprep.subr.mxu0 0.0
    %104 = vmatpush1.msra.mxu0 0.0
    %105 = vmatprep.subr.mxu0 0.0
    %106 = vmatpush1.msra.mxu0 %v69
    %107 = vmatprep.subr.mxu0 0.0
    %108 = vmatpush1.msra.mxu0 %v68
    %109 = vmatprep.subr.mxu0 0.0
    %110 = vmatpush1.msra.mxu0 %v67
    %111 = vmatprep.subr.mxu0 0.0
    %112 = vmatpush1.msra.mxu0 %v66
    %113 = vmatprep.subr.mxu0 0.0
    %114 = vmatpush2.msra.mxu0 0.0
    %115 = vmatprep.subr.mxu0 0.0
    %116 = vmatpush2.msra.mxu0 0.0
    %117 = vmatprep.subr.mxu0 0.0
    %118 = vmatpush2.msra.mxu0 0.0
    %119 = vmatprep.subr.mxu0 0.0
    %120 = vmatpush2.msra.mxu0 0.0
    %121 = vmatprep.subr.mxu0 0.0
    %122 = vmatpush2.msra.mxu0 0.0
    %123 = vmatprep.subr.mxu0 0.0
    %124 = vmatpush2.msra.mxu0 0.0
    %125 = vmatprep.subr.mxu0 0.0
    %126 = vmatpush2.msra.mxu0 0.0
    %127 = vmatprep.subr.mxu0 0.0
    %128 = vmatpush2.msra.mxu0 0.0
    %129 = vmatprep.subr.mxu0 0.0
    %130 = vmatpush2.msra.mxu0 0.0
    %131 = vmatprep.subr.mxu0 0.0
    %132 = vmatpush2.msra.mxu0 0.0
    %133 = vmatprep.subr.mxu0 0.0
    %134 = vmatpush2.msra.mxu0 0.0
    %135 = vmatprep.subr.mxu0 0.0
    %136 = vmatpush2.msra.mxu0 0.0
    %137 = vmatprep.subr.mxu0 0.0
    %138 = vmatpush2.msra.mxu0 0.0
    %139 = vmatprep.subr.mxu0 0.0
    %140 = vmatpush2.msra.mxu0 0.0
    %141 = vmatprep.subr.mxu0 0.0
    %142 = vmatpush2.msra.mxu0 0.0
    %143 = vmatprep.subr.mxu0 0.0
    %144 = vmatpush2.msra.mxu0 0.0
    %145 = vmatprep.mubr.f32.mxu0 0.0
    %146 = vmatmul.mubr.f32.gmra.mxu0 %v76
    %v147 = vpop.f32.mrf.mxu0
    %v148 = vadd.f32 %v74, %v147
    %v149 = vpop.f32.mrf.mxu0
    %150 = vmatprep.mubr.f32.mxu0 0.0
    %151 = vmatmul.mubr.f32.gmra.mxu0 %v79
    %v152 = vpop.f32.mrf.mxu0
    %v153 = vadd.f32 %v74, %v152
    %v154 = vpop.f32.mrf.mxu0
    %155 = vdwg.mxu0
    %v156 = vld [vmem:[#allocation2] sm:$0xff]
    %v157 = vld [vmem:[#allocation2 + $0x8] sm:$0xff]
    %v158 = vmul.f32 %v148, %v156
    %v159 = vmul.f32 %v153, %v157
    %162 = vrot.lane.b32.xlu0 %v158, 64
    %v163 = vpop.permute.xlu0 %162
    %164 = vrot.lane.b32.xlu0 %v159, 64
    %v165 = vpop.permute.xlu0 %164
    %v168 = vadd.f32 %v158, %v163
    %v169 = vadd.f32 %v159, %v165
    %171 = vrot.lane.b32.xlu0 %v168, 120
    %v172 = vpop.permute.xlu0 %171
    %173 = vrot.lane.b32.xlu0 %v168, 112
    %v174 = vpop.permute.xlu0 %173
    %175 = vrot.lane.b32.xlu0 %v168, 104
    %v176 = vpop.permute.xlu0 %175
    %178 = vrot.lane.b32.xlu0 %v169, 120
    %v179 = vpop.permute.xlu0 %178
    %180 = vrot.lane.b32.xlu0 %v169, 112
    %v181 = vpop.permute.xlu0 %180
    %182 = vrot.lane.b32.xlu0 %v169, 104
    %v183 = vpop.permute.xlu0 %182
    %v184 = vld [vmem:[#allocation2 + $0x18] sm:$0xff]
    %v185 = vld [vmem:[#allocation2 + $0x20] sm:$0xff]
    %v186 = vld [vmem:[#allocation2 + $0x28] sm:$0xff]
    %v187 = vld [vmem:[#allocation2 + $0x30] sm:$0xff]
    %v188 = vld [vmem:[#allocation2 + $0x38] sm:$0xff]
    %v189 = vld [vmem:[#allocation2 + $0x40] sm:$0xff]
    %v190 = vld [vmem:[#allocation2 + $0x48] sm:$0xff]
    %v191 = vld [vmem:[#allocation2 + $0x50] sm:$0xff]
    %192 = vrot.lane.b32.xlu0 %v168, 96
    %v193 = vpop.permute.xlu0 %192
    %194 = vrot.lane.b32.xlu0 %v174, 96
    %v195 = vpop.permute.xlu0 %194
    %196 = vrot.lane.b32.xlu0 %v169, 96
    %v197 = vpop.permute.xlu0 %196
    %198 = vrot.lane.b32.xlu0 %v181, 96
    %v199 = vpop.permute.xlu0 %198
    %vm200 = vcmask 64512
    %v201 = vsel %vm200, %v168, 0
    %v203 = vsel %vm200, %v172, 0
    %v205 = vsel %vm200, %v174, 0
    %v207 = vsel %vm200, %v176, 0
    %v209 = vsel %vm200, %v169, 0
    %v211 = vsel %vm200, %v179, 0
    %v213 = vsel %vm200, %v181, 0
    %v215 = vsel %vm200, %v183, 0
    %v217 = vsel %vm200, %v193, 0
    %v219 = vsel %vm200, %v195, 0
    %v221 = vsel %vm200, %v197, 0
    %v223 = vsel %vm200, %v199, 0
    %225 = vmatprep.subr.mxu0 0.0
    %226 = vmatpush1.xpose.msra.mxu0 0.0
    %227 = vmatprep.subr.mxu0 0.0
    %228 = vmatpush1.xpose.msra.mxu0 0.0
    %229 = vmatprep.subr.mxu0 0.0
    %230 = vmatpush1.xpose.msra.mxu0 0.0
    %231 = vmatprep.subr.mxu0 0.0
    %232 = vmatpush1.xpose.msra.mxu0 0.0
    %233 = vmatprep.subr.mxu0 0.0
    %234 = vmatpush1.xpose.msra.mxu0 0.0
    %235 = vmatprep.subr.mxu0 0.0
    %236 = vmatpush1.xpose.msra.mxu0 0.0
    %237 = vmatprep.subr.mxu0 0.0
    %238 = vmatpush1.xpose.msra.mxu0 0.0
    %239 = vmatprep.subr.mxu0 0.0
    %240 = vmatpush1.xpose.msra.mxu0 0.0
    %241 = vmatprep.subr.mxu0 0.0
    %242 = vmatpush1.xpose.msra.mxu0 0.0
    %243 = vmatprep.subr.mxu0 0.0
    %244 = vmatpush1.xpose.msra.mxu0 0.0
    %245 = vmatprep.subr.mxu0 0.0
    %246 = vmatpush1.xpose.msra.mxu0 0.0
    %247 = vmatprep.subr.mxu0 0.0
    %248 = vmatpush1.xpose.msra.mxu0 0.0
    %249 = vmatprep.subr.mxu0 0.0
    %250 = vmatpush1.xpose.msra.mxu0 %v223
    %251 = vmatprep.subr.mxu0 0.0
    %252 = vmatpush1.xpose.msra.mxu0 %v221
    %253 = vmatprep.subr.mxu0 0.0
    %254 = vmatpush1.xpose.msra.mxu0 %v219
    %255 = vmatprep.subr.mxu0 0.0
    %256 = vmatpush1.xpose.msra.mxu0 %v217
    %257 = vmatprep.subr.mxu0 0.0
    %258 = vmatpush2.xpose.msra.mxu0 0.0
    %259 = vmatprep.subr.mxu0 0.0
    %260 = vmatpush2.xpose.msra.mxu0 0.0
    %261 = vmatprep.subr.mxu0 0.0
    %262 = vmatpush2.xpose.msra.mxu0 0.0
    %263 = vmatprep.subr.mxu0 0.0
    %264 = vmatpush2.xpose.msra.mxu0 0.0
    %265 = vmatprep.subr.mxu0 0.0
    %266 = vmatpush2.xpose.msra.mxu0 0.0
    %267 = vmatprep.subr.mxu0 0.0
    %268 = vmatpush2.xpose.msra.mxu0 0.0
    %269 = vmatprep.subr.mxu0 0.0
    %270 = vmatpush2.xpose.msra.mxu0 0.0
    %271 = vmatprep.subr.mxu0 0.0
    %272 = vmatpush2.xpose.msra.mxu0 0.0
    %273 = vmatprep.subr.mxu0 0.0
    %274 = vmatpush2.xpose.msra.mxu0 0.0
    %275 = vmatprep.subr.mxu0 0.0
    %276 = vmatpush2.xpose.msra.mxu0 0.0
    %277 = vmatprep.subr.mxu0 0.0
    %278 = vmatpush2.xpose.msra.mxu0 0.0
    %279 = vmatprep.subr.mxu0 0.0
    %280 = vmatpush2.xpose.msra.mxu0 0.0
    %281 = vmatprep.subr.mxu0 0.0
    %282 = vmatpush2.xpose.msra.mxu0 0.0
    %283 = vmatprep.subr.mxu0 0.0
    %284 = vmatpush2.xpose.msra.mxu0 0.0
    %285 = vmatprep.subr.mxu0 0.0
    %286 = vmatpush2.xpose.msra.mxu0 0.0
    %287 = vmatprep.subr.mxu0 0.0
    %288 = vmatpush2.xpose.msra.mxu0 0.0
    %289 = vmatprep.mubr.f32.mxu0 0.0
    %290 = vmatmul.mubr.f32.gmra.mxu0 %v201
    %v291 = vpop.f32.mrf.mxu0
    %v292 = vadd.f32 %v184, %v291
    %v293 = vpop.f32.mrf.mxu0
    %294 = vmatprep.mubr.f32.mxu0 0.0
    %295 = vmatmul.mubr.f32.gmra.mxu0 %v203
    %v296 = vpop.f32.mrf.mxu0
    %v297 = vadd.f32 %v185, %v296
    %v298 = vpop.f32.mrf.mxu0
    %299 = vmatprep.mubr.f32.mxu0 0.0
    %300 = vmatmul.mubr.f32.gmra.mxu0 %v205
    %v301 = vpop.f32.mrf.mxu0
    %v302 = vadd.f32 %v186, %v301
    %v303 = vpop.f32.mrf.mxu0
    %304 = vmatprep.mubr.f32.mxu0 0.0
    %305 = vmatmul.mubr.f32.gmra.mxu0 %v207
    %v306 = vpop.f32.mrf.mxu0
    %v307 = vadd.f32 %v187, %v306
    %v308 = vpop.f32.mrf.mxu0
    %309 = vmatprep.mubr.f32.mxu0 0.0
    %310 = vmatmul.mubr.f32.gmra.mxu0 %v209
    %v311 = vpop.f32.mrf.mxu0
    %v312 = vadd.f32 %v188, %v311
    %v313 = vpop.f32.mrf.mxu0
    %314 = vmatprep.mubr.f32.mxu0 0.0
    %315 = vmatmul.mubr.f32.gmra.mxu0 %v211
    %v316 = vpop.f32.mrf.mxu0
    %v317 = vadd.f32 %v189, %v316
    %v318 = vpop.f32.mrf.mxu0
    %319 = vmatprep.mubr.f32.mxu0 0.0
    %320 = vmatmul.mubr.f32.gmra.mxu0 %v213
    %v321 = vpop.f32.mrf.mxu0
    %v322 = vadd.f32 %v190, %v321
    %v323 = vpop.f32.mrf.mxu0
    %324 = vmatprep.mubr.f32.mxu0 0.0
    %325 = vmatmul.mubr.f32.gmra.mxu0 %v215
    %v326 = vpop.f32.mrf.mxu0
    %v327 = vadd.f32 %v191, %v326
    %v328 = vpop.f32.mrf.mxu0
    %329 = vdwg.mxu0
    %v330 = vsel %vm38, %v292, -inf
    %331 = vmax.xlane.f32.xlu0 %v330
    %v332 = vpop.xlane.xlu0 %331
    %v333 = vsel %vm38, %v297, -inf
    %334 = vmax.xlane.f32.xlu0 %v333
    %v335 = vpop.xlane.xlu0 %334
    %v336 = vsel %vm38, %v302, -inf
    %337 = vmax.xlane.f32.xlu0 %v336
    %v338 = vpop.xlane.xlu0 %337
    %v339 = vsel %vm38, %v307, -inf
    %340 = vmax.xlane.f32.xlu0 %v339
    %v341 = vpop.xlane.xlu0 %340
    %v342 = vsel %vm38, %v312, -inf
    %343 = vmax.xlane.f32.xlu0 %v342
    %v344 = vpop.xlane.xlu0 %343
    %v345 = vsel %vm38, %v317, -inf
    %346 = vmax.xlane.f32.xlu0 %v345
    %v347 = vpop.xlane.xlu0 %346
    %v348 = vsel %vm38, %v322, -inf
    %349 = vmax.xlane.f32.xlu0 %v348
    %v350 = vpop.xlane.xlu0 %349
    %v351 = vsel %vm38, %v327, -inf
    %352 = vmax.xlane.f32.xlu0 %v351
    %v353 = vpop.xlane.xlu0 %352
    %v354 = vsub.f32 %v292, %v332
    %v355 = vsub.f32 %v297, %v335
    %v356 = vsub.f32 %v302, %v338
    %v357 = vsub.f32 %v307, %v341
    %v358 = vsub.f32 %v312, %v344
    %v359 = vsub.f32 %v317, %v347
    %v360 = vsub.f32 %v322, %v350
    %v361 = vsub.f32 %v327, %v353
    %v362 = vmul.f32 %v354, 1.442695
    %v363 = vpow.pop %v362
    %v364 = vmul.f32 %v355, 1.442695
    %v365 = vpow.pop %v364
    %v366 = vmul.f32 %v356, 1.442695
    %v367 = vpow.pop %v366
    %v368 = vmul.f32 %v357, 1.442695
    %v369 = vpow.pop %v368
    %v370 = vmul.f32 %v358, 1.442695
    %v371 = vpow.pop %v370
    %v372 = vmul.f32 %v359, 1.442695
    %v373 = vpow.pop %v372
    %v374 = vmul.f32 %v360, 1.442695
    %v375 = vpow.pop %v374
    %v376 = vmul.f32 %v361, 1.442695
    %v377 = vpow.pop %v376
    %v378 = vsel %vm38, %v363, 0.0
    %379 = vadd.xlane.f32.xlu0 %v378
    %v380 = vpop.xlane.xlu0 %379
    %v381 = vsel %vm38, %v365, 0.0
    %382 = vadd.xlane.f32.xlu0 %v381
    %v383 = vpop.xlane.xlu0 %382
    %v384 = vsel %vm38, %v367, 0.0
    %385 = vadd.xlane.f32.xlu0 %v384
    %v386 = vpop.xlane.xlu0 %385
    %v387 = vsel %vm38, %v369, 0.0
    %388 = vadd.xlane.f32.xlu0 %v387
    %v389 = vpop.xlane.xlu0 %388
    %v390 = vsel %vm38, %v371, 0.0
    %391 = vadd.xlane.f32.xlu0 %v390
    %v392 = vpop.xlane.xlu0 %391
    %v393 = vsel %vm38, %v373, 0.0
    %394 = vadd.xlane.f32.xlu0 %v393
    %v395 = vpop.xlane.xlu0 %394
    %v396 = vsel %vm38, %v375, 0.0
    %397 = vadd.xlane.f32.xlu0 %v396
    %v398 = vpop.xlane.xlu0 %397
    %v399 = vsel %vm38, %v377, 0.0
    %400 = vadd.xlane.f32.xlu0 %v399
    %v401 = vpop.xlane.xlu0 %400
    %v402 = vrcp.pop %v380
    %v403 = vrcp.pop %v383
    %v404 = vrcp.pop %v386
    %v405 = vrcp.pop %v389
    %v406 = vrcp.pop %v392
    %v407 = vrcp.pop %v395
    %v408 = vrcp.pop %v398
    %v409 = vrcp.pop %v401
    %v410 = vmul.f32 %v363, %v402
    %v411 = vmul.f32 %v365, %v403
    %v412 = vmul.f32 %v367, %v404
    %v413 = vmul.f32 %v369, %v405
    %v414 = vmul.f32 %v371, %v406
    %v415 = vmul.f32 %v373, %v407
    %v416 = vmul.f32 %v375, %v408
    %v417 = vmul.f32 %v377, %v409
    %418 = vrot.lane.b32.xlu0 %v168, 88
    %v419 = vpop.permute.xlu0 %418
    %420 = vrot.lane.b32.xlu0 %v174, 88
    %v421 = vpop.permute.xlu0 %420
    %422 = vrot.lane.b32.xlu0 %v169, 88
    %v423 = vpop.permute.xlu0 %422
    %424 = vrot.lane.b32.xlu0 %v181, 88
    %v425 = vpop.permute.xlu0 %424
    %v431 = vsel %vm38, %v410, 0
    %v434 = vsel %vm38, %v411, 0
    %v437 = vsel %vm38, %v412, 0
    %v440 = vsel %vm38, %v413, 0
    %v443 = vsel %vm38, %v414, 0
    %v446 = vsel %vm38, %v415, 0
    %v449 = vsel %vm38, %v416, 0
    %v452 = vsel %vm38, %v417, 0
    %454 = vmatprep.subr.mxu0 0.0
    %455 = vmatpush1.msra.mxu0 0.0
    %456 = vmatprep.subr.mxu0 0.0
    %457 = vmatpush1.msra.mxu0 0.0
    %458 = vmatprep.subr.mxu0 0.0
    %459 = vmatpush1.msra.mxu0 0.0
    %460 = vmatprep.subr.mxu0 0.0
    %461 = vmatpush1.msra.mxu0 0.0
    %462 = vmatprep.subr.mxu0 0.0
    %463 = vmatpush1.msra.mxu0 0.0
    %464 = vmatprep.subr.mxu0 0.0
    %465 = vmatpush1.msra.mxu0 0.0
    %466 = vmatprep.subr.mxu0 0.0
    %467 = vmatpush1.msra.mxu0 0.0
    %468 = vmatprep.subr.mxu0 0.0
    %469 = vmatpush1.msra.mxu0 0.0
    %470 = vmatprep.subr.mxu0 0.0
    %471 = vmatpush1.msra.mxu0 0.0
    %472 = vmatprep.subr.mxu0 0.0
    %473 = vmatpush1.msra.mxu0 0.0
    %474 = vmatprep.subr.mxu0 0.0
    %475 = vmatpush1.msra.mxu0 0.0
    %476 = vmatprep.subr.mxu0 0.0
    %477 = vmatpush1.msra.mxu0 0.0
    %478 = vmatprep.subr.mxu0 0.0
    %479 = vmatpush1.msra.mxu0 %v425
    %480 = vmatprep.subr.mxu0 0.0
    %481 = vmatpush1.msra.mxu0 %v423
    %482 = vmatprep.subr.mxu0 0.0
    %483 = vmatpush1.msra.mxu0 %v421
    %484 = vmatprep.subr.mxu0 0.0
    %485 = vmatpush1.msra.mxu0 %v419
    %486 = vmatprep.subr.mxu0 0.0
    %487 = vmatpush2.msra.mxu0 0.0
    %488 = vmatprep.subr.mxu0 0.0
    %489 = vmatpush2.msra.mxu0 0.0
    %490 = vmatprep.subr.mxu0 0.0
    %491 = vmatpush2.msra.mxu0 0.0
    %492 = vmatprep.subr.mxu0 0.0
    %493 = vmatpush2.msra.mxu0 0.0
    %494 = vmatprep.subr.mxu0 0.0
    %495 = vmatpush2.msra.mxu0 0.0
    %496 = vmatprep.subr.mxu0 0.0
    %497 = vmatpush2.msra.mxu0 0.0
    %498 = vmatprep.subr.mxu0 0.0
    %499 = vmatpush2.msra.mxu0 0.0
    %500 = vmatprep.subr.mxu0 0.0
    %501 = vmatpush2.msra.mxu0 0.0
    %502 = vmatprep.subr.mxu0 0.0
    %503 = vmatpush2.msra.mxu0 0.0
    %504 = vmatprep.subr.mxu0 0.0
    %505 = vmatpush2.msra.mxu0 0.0
    %506 = vmatprep.subr.mxu0 0.0
    %507 = vmatpush2.msra.mxu0 0.0
    %508 = vmatprep.subr.mxu0 0.0
    %509 = vmatpush2.msra.mxu0 0.0
    %510 = vmatprep.subr.mxu0 0.0
    %511 = vmatpush2.msra.mxu0 0.0
    %512 = vmatprep.subr.mxu0 0.0
    %513 = vmatpush2.msra.mxu0 0.0
    %514 = vmatprep.subr.mxu0 0.0
    %515 = vmatpush2.msra.mxu0 0.0
    %516 = vmatprep.subr.mxu0 0.0
    %517 = vmatpush2.msra.mxu0 0.0
    %518 = vmatprep.mubr.f32.mxu0 0.0
    %519 = vmatmul.mubr.f32.gmra.mxu0 %v431
    %v520 = vpop.f32.mrf.mxu0
    %v521 = vadd.f32 0.0, %v520
    %v522 = vpop.f32.mrf.mxu0
    %523 = vmatprep.mubr.f32.mxu0 0.0
    %524 = vmatmul.mubr.f32.gmra.mxu0 %v434
    %v525 = vpop.f32.mrf.mxu0
    %v526 = vadd.f32 0.0, %v525
    %v527 = vpop.f32.mrf.mxu0
    %528 = vmatprep.mubr.f32.mxu0 0.0
    %529 = vmatmul.mubr.f32.gmra.mxu0 %v437
    %v530 = vpop.f32.mrf.mxu0
    %v531 = vadd.f32 0.0, %v530
    %v532 = vpop.f32.mrf.mxu0
    %533 = vmatprep.mubr.f32.mxu0 0.0
    %534 = vmatmul.mubr.f32.gmra.mxu0 %v440
    %v535 = vpop.f32.mrf.mxu0
    %v536 = vadd.f32 0.0, %v535
    %v537 = vpop.f32.mrf.mxu0
    %538 = vmatprep.mubr.f32.mxu0 0.0
    %539 = vmatmul.mubr.f32.gmra.mxu0 %v443
    %v540 = vpop.f32.mrf.mxu0
    %v541 = vadd.f32 0.0, %v540
    %v542 = vpop.f32.mrf.mxu0
    %543 = vmatprep.mubr.f32.mxu0 0.0
    %544 = vmatmul.mubr.f32.gmra.mxu0 %v446
    %v545 = vpop.f32.mrf.mxu0
    %v546 = vadd.f32 0.0, %v545
    %v547 = vpop.f32.mrf.mxu0
    %548 = vmatprep.mubr.f32.mxu0 0.0
    %549 = vmatmul.mubr.f32.gmra.mxu0 %v449
    %v550 = vpop.f32.mrf.mxu0
    %v551 = vadd.f32 0.0, %v550
    %v552 = vpop.f32.mrf.mxu0
    %553 = vmatprep.mubr.f32.mxu0 0.0
    %554 = vmatmul.mubr.f32.gmra.mxu0 %v452
    %v555 = vpop.f32.mrf.mxu0
    %v556 = vadd.f32 0.0, %v555
    %v557 = vpop.f32.mrf.mxu0
    %558 = vdwg.mxu0
    %560 = vrot.lane.b32.xlu0 %v526, 8
    %v561 = vpop.permute.xlu0 %560
    %564 = vrot.lane.b32.xlu0 %v531, 16
    %v565 = vpop.permute.xlu0 %564
    %568 = vrot.lane.b32.xlu0 %v536, 24
    %v569 = vpop.permute.xlu0 %568
    %v571 = vsel %vm200, %v521, %v561
    %vm572 = vcmask 130048
    %v573 = vsel %vm572, %v571, %v565
    %vm574 = vcmask 195584
    %v575 = vsel %vm574, %v573, %v569
    %577 = vrot.lane.b32.xlu0 %v546, 8
    %v578 = vpop.permute.xlu0 %577
    %581 = vrot.lane.b32.xlu0 %v551, 16
    %v582 = vpop.permute.xlu0 %581
    %585 = vrot.lane.b32.xlu0 %v556, 24
    %v586 = vpop.permute.xlu0 %585
    %v588 = vsel %vm200, %v541, %v578
    %v589 = vsel %vm572, %v588, %v582
    %v590 = vsel %vm574, %v589, %v586
    %v591 = vld [vmem:[%s1 + $0x10] sm:$0xff]
    %v592 = vld [vmem:[%s1 + $0x28] sm:$0xff]
    %v593 = vld [vmem:[%s1 + $0x40] sm:$0xff]
    %v594 = vld [vmem:[%s1 + $0x58] sm:$0xff]
    %v595 = vld [vmem:[#allocation2 + $0x12] sm:$0x1]
    %v596 = vlaneseq
    %v597 = vshrl.u32 %v596, 7
    %v598 = vsub.s32 0, %v597
    %v599 = vrot.slane %v595, %v598
    %v601 = vsel %vm38, %v575, 0
    %v604 = vsel %vm38, %v590, 0
    %606 = vmatprep.subr.mxu0 0.0
    %607 = vmatpush1.msra.mxu0 0.0
    %608 = vmatprep.subr.mxu0 0.0
    %609 = vmatpush1.msra.mxu0 0.0
    %610 = vmatprep.subr.mxu0 0.0
    %611 = vmatpush1.msra.mxu0 0.0
    %612 = vmatprep.subr.mxu0 0.0
    %613 = vmatpush1.msra.mxu0 0.0
    %614 = vmatprep.subr.mxu0 0.0
    %615 = vmatpush1.msra.mxu0 0.0
    %616 = vmatprep.subr.mxu0 0.0
    %617 = vmatpush1.msra.mxu0 0.0
    %618 = vmatprep.subr.mxu0 0.0
    %619 = vmatpush1.msra.mxu0 0.0
    %620 = vmatprep.subr.mxu0 0.0
    %621 = vmatpush1.msra.mxu0 0.0
    %622 = vmatprep.subr.mxu0 0.0
    %623 = vmatpush1.msra.mxu0 0.0
    %624 = vmatprep.subr.mxu0 0.0
    %625 = vmatpush1.msra.mxu0 0.0
    %626 = vmatprep.subr.mxu0 0.0
    %627 = vmatpush1.msra.mxu0 0.0
    %628 = vmatprep.subr.mxu0 0.0
    %629 = vmatpush1.msra.mxu0 0.0
    %630 = vmatprep.subr.mxu0 0.0
    %631 = vmatpush1.msra.mxu0 %v594
    %632 = vmatprep.subr.mxu0 0.0
    %633 = vmatpush1.msra.mxu0 %v593
    %634 = vmatprep.subr.mxu0 0.0
    %635 = vmatpush1.msra.mxu0 %v592
    %636 = vmatprep.subr.mxu0 0.0
    %637 = vmatpush1.msra.mxu0 %v591
    %638 = vmatprep.subr.mxu0 0.0
    %639 = vmatpush2.msra.mxu0 0.0
    %640 = vmatprep.subr.mxu0 0.0
    %641 = vmatpush2.msra.mxu0 0.0
    %642 = vmatprep.subr.mxu0 0.0
    %643 = vmatpush2.msra.mxu0 0.0
    %644 = vmatprep.subr.mxu0 0.0
    %645 = vmatpush2.msra.mxu0 0.0
    %646 = vmatprep.subr.mxu0 0.0
    %647 = vmatpush2.msra.mxu0 0.0
    %648 = vmatprep.subr.mxu0 0.0
    %649 = vmatpush2.msra.mxu0 0.0
    %650 = vmatprep.subr.mxu0 0.0
    %651 = vmatpush2.msra.mxu0 0.0
    %652 = vmatprep.subr.mxu0 0.0
    %653 = vmatpush2.msra.mxu0 0.0
    %654 = vmatprep.subr.mxu0 0.0
    %655 = vmatpush2.msra.mxu0 0.0
    %656 = vmatprep.subr.mxu0 0.0
    %657 = vmatpush2.msra.mxu0 0.0
    %658 = vmatprep.subr.mxu0 0.0
    %659 = vmatpush2.msra.mxu0 0.0
    %660 = vmatprep.subr.mxu0 0.0
    %661 = vmatpush2.msra.mxu0 0.0
    %662 = vmatprep.subr.mxu0 0.0
    %663 = vmatpush2.msra.mxu0 0.0
    %664 = vmatprep.subr.mxu0 0.0
    %665 = vmatpush2.msra.mxu0 0.0
    %666 = vmatprep.subr.mxu0 0.0
    %667 = vmatpush2.msra.mxu0 0.0
    %668 = vmatprep.subr.mxu0 0.0
    %669 = vmatpush2.msra.mxu0 0.0
    %670 = vmatprep.mubr.f32.mxu0 0.0
    %671 = vmatmul.mubr.f32.gmra.mxu0 %v601
    %v672 = vpop.f32.mrf.mxu0
    %v673 = vadd.f32 %v599, %v672
    %v674 = vpop.f32.mrf.mxu0
    %675 = vmatprep.mubr.f32.mxu0 0.0
    %676 = vmatmul.mubr.f32.gmra.mxu0 %v604
    %v677 = vpop.f32.mrf.mxu0
    %v678 = vadd.f32 %v599, %v677
    %v679 = vpop.f32.mrf.mxu0
    %680 = vdwg.mxu0
    %v681 = vadd.f32 %v673, %v36
    %v682 = vadd.f32 %v678, %v37
    %v683 = vsel %vm38, %v681, 0.0
    %684 = vadd.xlane.f32.xlu0 %v683
    %v685 = vpop.xlane.xlu0 %684
    %v686 = vsel %vm38, %v682, 0.0
    %687 = vadd.xlane.f32.xlu0 %v686
    %v688 = vpop.xlane.xlu0 %687
    %v689 = vmul.f32 %v685, %v45
    %v690 = vmul.f32 %v688, %v45
    %v691 = vsub.f32 %v681, %v689
    %v692 = vsub.f32 %v682, %v690
    %v693 = vmul.f32 %v691, %v691
    %v694 = vmul.f32 %v692, %v692
    %v695 = vsel %vm38, %v693, 0.0
    %696 = vadd.xlane.f32.xlu0 %v695
    %v697 = vpop.xlane.xlu0 %696
    %v698 = vsel %vm38, %v694, 0.0
    %699 = vadd.xlane.f32.xlu0 %v698
    %v700 = vpop.xlane.xlu0 %699
    %v701 = vmul.f32 %v697, %v45
    %v702 = vmul.f32 %v700, %v45
    %v703 = vadd.f32 %v701, 1e-05
    %v704 = vadd.f32 %v702, 1e-05
    %v705 = vrsqrt.pop %v703
    %v706 = vrsqrt.pop %v704
    %v707 = vmul.f32 %v691, %v705
    %v708 = vmul.f32 %v692, %v706
    %v709 = vld [vmem:[%s1 + $0x8] sm:$0xff]
    %v710 = vld [vmem:[%s1 + $0x20] sm:$0xff]
    %v711 = vld [vmem:[%s1 + $0x38] sm:$0xff]
    %v712 = vld [vmem:[%s1 + $0x50] sm:$0xff]
    %v713 = vld [vmem:[#allocation2 + $0x11] sm:$0x1]
    %v714 = vlaneseq
    %v715 = vshrl.u32 %v714, 7
    %v716 = vsub.s32 0, %v715
    %v717 = vrot.slane %v713, %v716
    %v719 = vsel %vm38, %v707, 0
    %v722 = vsel %vm38, %v708, 0
    %724 = vmatprep.subr.mxu0 0.0
    %725 = vmatpush1.msra.mxu0 0.0
    %726 = vmatprep.subr.mxu0 0.0
    %727 = vmatpush1.msra.mxu0 0.0
    %728 = vmatprep.subr.mxu0 0.0
    %729 = vmatpush1.msra.mxu0 0.0
    %730 = vmatprep.subr.mxu0 0.0
    %731 = vmatpush1.msra.mxu0 0.0
    %732 = vmatprep.subr.mxu0 0.0
    %733 = vmatpush1.msra.mxu0 0.0
    %734 = vmatprep.subr.mxu0 0.0
    %735 = vmatpush1.msra.mxu0 0.0
    %736 = vmatprep.subr.mxu0 0.0
    %737 = vmatpush1.msra.mxu0 0.0
    %738 = vmatprep.subr.mxu0 0.0
    %739 = vmatpush1.msra.mxu0 0.0
    %740 = vmatprep.subr.mxu0 0.0
    %741 = vmatpush1.msra.mxu0 0.0
    %742 = vmatprep.subr.mxu0 0.0
    %743 = vmatpush1.msra.mxu0 0.0
    %744 = vmatprep.subr.mxu0 0.0
    %745 = vmatpush1.msra.mxu0 0.0
    %746 = vmatprep.subr.mxu0 0.0
    %747 = vmatpush1.msra.mxu0 0.0
    %748 = vmatprep.subr.mxu0 0.0
    %749 = vmatpush1.msra.mxu0 %v712
    %750 = vmatprep.subr.mxu0 0.0
    %751 = vmatpush1.msra.mxu0 %v711
    %752 = vmatprep.subr.mxu0 0.0
    %753 = vmatpush1.msra.mxu0 %v710
    %754 = vmatprep.subr.mxu0 0.0
    %755 = vmatpush1.msra.mxu0 %v709
    %756 = vmatprep.subr.mxu0 0.0
    %757 = vmatpush2.msra.mxu0 0.0
    %758 = vmatprep.subr.mxu0 0.0
    %759 = vmatpush2.msra.mxu0 0.0
    %760 = vmatprep.subr.mxu0 0.0
    %761 = vmatpush2.msra.mxu0 0.0
    %762 = vmatprep.subr.mxu0 0.0
    %763 = vmatpush2.msra.mxu0 0.0
    %764 = vmatprep.subr.mxu0 0.0
    %765 = vmatpush2.msra.mxu0 0.0
    %766 = vmatprep.subr.mxu0 0.0
    %767 = vmatpush2.msra.mxu0 0.0
    %768 = vmatprep.subr.mxu0 0.0
    %769 = vmatpush2.msra.mxu0 0.0
    %770 = vmatprep.subr.mxu0 0.0
    %771 = vmatpush2.msra.mxu0 0.0
    %772 = vmatprep.subr.mxu0 0.0
    %773 = vmatpush2.msra.mxu0 0.0
    %774 = vmatprep.subr.mxu0 0.0
    %775 = vmatpush2.msra.mxu0 0.0
    %776 = vmatprep.subr.mxu0 0.0
    %777 = vmatpush2.msra.mxu0 0.0
    %778 = vmatprep.subr.mxu0 0.0
    %779 = vmatpush2.msra.mxu0 0.0
    %780 = vmatprep.subr.mxu0 0.0
    %781 = vmatpush2.msra.mxu0 0.0
    %782 = vmatprep.subr.mxu0 0.0
    %783 = vmatpush2.msra.mxu0 0.0
    %784 = vmatprep.subr.mxu0 0.0
    %785 = vmatpush2.msra.mxu0 0.0
    %786 = vmatprep.subr.mxu0 0.0
    %787 = vmatpush2.msra.mxu0 0.0
    %788 = vmatprep.mubr.f32.mxu0 0.0
    %789 = vmatmul.mubr.f32.gmra.mxu0 %v719
    %v790 = vpop.f32.mrf.mxu0
    %v791 = vadd.f32 %v717, %v790
    %v792 = vpop.f32.mrf.mxu0
    %793 = vmatprep.mubr.f32.mxu0 0.0
    %794 = vmatmul.mubr.f32.gmra.mxu0 %v722
    %v795 = vpop.f32.mrf.mxu0
    %v796 = vadd.f32 %v717, %v795
    %v797 = vpop.f32.mrf.mxu0
    %798 = vdwg.mxu0
    %v799 = vmul.f32 %v791, %v791
    %v800 = vmul.f32 %v796, %v796
    %v801 = vmul.f32 %v791, %v799
    %v802 = vmul.f32 %v796, %v800
    %v803 = vmul.f32 %v801, 0.044715
    %v804 = vmul.f32 %v802, 0.044715
    %v805 = vadd.f32 %v791, %v803
    %v806 = vadd.f32 %v796, %v804
    %v807 = vmul.f32 %v805, 0.7978846
    %v808 = vmul.f32 %v806, 0.7978846
    %v809 = vtanh.pop %v807
    %v810 = vtanh.pop %v808
    %v811 = vadd.f32 %v809, 1.0
    %v812 = vadd.f32 %v810, 1.0
    %v813 = vmul.f32 %v811, 0.5
    %v814 = vmul.f32 %v812, 0.5
    %v815 = vmul.f32 %v791, %v813
    %v816 = vmul.f32 %v796, %v814
    %v817 = vld [vmem:[%s2] sm:$0xff]
    %v818 = vld [vmem:[%s2 + $0x8] sm:$0xff]
    %v819 = vld [vmem:[%s2 + $0x10] sm:$0xff]
    %v820 = vld [vmem:[%s2 + $0x18] sm:$0xff]
    %v821 = vld [vmem:[%s2 + $0x20] sm:$0xff]
    %v822 = vld [vmem:[%s2 + $0x28] sm:$0xff]
    %v823 = vld [vmem:[%s2 + $0x30] sm:$0xff]
    %v824 = vld [vmem:[%s2 + $0x38] sm:$0xff]
    %v825 = vld [vmem:[%s2 + $0x40] sm:$0xff]
    %v826 = vld [vmem:[%s2 + $0x48] sm:$0xff]
    %v827 = vld [vmem:[%s2 + $0x50] sm:$0xff]
    %v828 = vld [vmem:[%s2 + $0x58] sm:$0xff]
    %v829 = vld [vmem:[%s2 + $0x60] sm:$0xff]
    %v830 = vld [vmem:[%s2 + $0x68] sm:$0xff]
    %v831 = vld [vmem:[%s2 + $0x70] sm:$0xff]
    %v832 = vld [vmem:[%s2 + $0x78] sm:$0xff]
    %834 = vrot.lane.b32.xlu0 %v599, 96
    %v835 = vpop.permute.xlu0 %834
    %837 = vmatprep.subr.mxu0 0.0
    %838 = vmatpush1.msra.mxu0 %v832
    %839 = vmatprep.subr.mxu0 0.0
    %840 = vmatpush1.msra.mxu0 %v831
    %841 = vmatprep.subr.mxu0 0.0
    %842 = vmatpush1.msra.mxu0 %v830
    %843 = vmatprep.subr.mxu0 0.0
    %844 = vmatpush1.msra.mxu0 %v829
    %845 = vmatprep.subr.mxu0 0.0
    %846 = vmatpush1.msra.mxu0 %v828
    %847 = vmatprep.subr.mxu0 0.0
    %848 = vmatpush1.msra.mxu0 %v827
    %849 = vmatprep.subr.mxu0 0.0
    %850 = vmatpush1.msra.mxu0 %v826
    %851 = vmatprep.subr.mxu0 0.0
    %852 = vmatpush1.msra.mxu0 %v825
    %853 = vmatprep.subr.mxu0 0.0
    %854 = vmatpush1.msra.mxu0 %v824
    %855 = vmatprep.subr.mxu0 0.0
    %856 = vmatpush1.msra.mxu0 %v823
    %857 = vmatprep.subr.mxu0 0.0
    %858 = vmatpush1.msra.mxu0 %v822
    %859 = vmatprep.subr.mxu0 0.0
    %860 = vmatpush1.msra.mxu0 %v821
    %861 = vmatprep.subr.mxu0 0.0
    %862 = vmatpush1.msra.mxu0 %v820
    %863 = vmatprep.subr.mxu0 0.0
    %864 = vmatpush1.msra.mxu0 %v819
    %865 = vmatprep.subr.mxu0 0.0
    %866 = vmatpush1.msra.mxu0 %v818
    %867 = vmatprep.subr.mxu0 0.0
    %868 = vmatpush1.msra.mxu0 %v817
    %869 = vmatprep.subr.mxu0 0.0
    %870 = vmatpush2.msra.mxu0 0.0
    %871 = vmatprep.subr.mxu0 0.0
    %872 = vmatpush2.msra.mxu0 0.0
    %873 = vmatprep.subr.mxu0 0.0
    %874 = vmatpush2.msra.mxu0 0.0
    %875 = vmatprep.subr.mxu0 0.0
    %876 = vmatpush2.msra.mxu0 0.0
    %877 = vmatprep.subr.mxu0 0.0
    %878 = vmatpush2.msra.mxu0 0.0
    %879 = vmatprep.subr.mxu0 0.0
    %880 = vmatpush2.msra.mxu0 0.0
    %881 = vmatprep.subr.mxu0 0.0
    %882 = vmatpush2.msra.mxu0 0.0
    %883 = vmatprep.subr.mxu0 0.0
    %884 = vmatpush2.msra.mxu0 0.0
    %885 = vmatprep.subr.mxu0 0.0
    %886 = vmatpush2.msra.mxu0 0.0
    %887 = vmatprep.subr.mxu0 0.0
    %888 = vmatpush2.msra.mxu0 0.0
    %889 = vmatprep.subr.mxu0 0.0
    %890 = vmatpush2.msra.mxu0 0.0
    %891 = vmatprep.subr.mxu0 0.0
    %892 = vmatpush2.msra.mxu0 0.0
    %893 = vmatprep.subr.mxu0 0.0
    %894 = vmatpush2.msra.mxu0 0.0
    %895 = vmatprep.subr.mxu0 0.0
    %896 = vmatpush2.msra.mxu0 0.0
    %897 = vmatprep.subr.mxu0 0.0
    %898 = vmatpush2.msra.mxu0 0.0
    %899 = vmatprep.subr.mxu0 0.0
    %900 = vmatpush2.msra.mxu0 0.0
    %901 = vmatprep.mubr.f32.mxu0 0.0
    %902 = vmatmul.mubr.f32.gmra.mxu0 %v815
    %v903 = vpop.f32.mrf.mxu0
    %v904 = vadd.f32 %v835, %v903
    %v905 = vpop.f32.mrf.mxu0
    %906 = vmatprep.mubr.f32.mxu0 0.0
    %907 = vmatmul.mubr.f32.gmra.mxu0 %v816
    %v908 = vpop.f32.mrf.mxu0
    %v909 = vadd.f32 %v835, %v908
    %v910 = vpop.f32.mrf.mxu0
    %911 = vdwg.mxu0
    %v912 = vadd.f32 %v904, %v681
    %v913 = vadd.f32 %v909, %v682
    %914 = vst.msk [vmem:[#allocation5] sm:$0xff] %vm38, %v912
    %915 = vst.msk [vmem:[#allocation5 + $0x8] sm:$0xff] %vm38, %v913
    %917 = vst.msk [vmem:[#allocation6] sm:$0xff] %vm200, %v193
    %918 = vst.msk [vmem:[#allocation6 + $0x8] sm:$0xff] %vm200, %v193
    %919 = vst.msk [vmem:[#allocation8] sm:$0xff] %vm200, %v419
    %920 = vst.msk [vmem:[#allocation8 + $0x8] sm:$0xff] %vm200, %v419
    %921 = vrot.lane.b32.xlu0 %v168, 80
    %v922 = vpop.permute.xlu0 %921
    %s924 = scalar_lea.vmem [#allocation6], 16
    %925 = vst.msk [vmem:[%s924] sm:$0xff] %vm200, %v922
    %926 = vst.msk [vmem:[%s924 + $0x8] sm:$0xff] %vm200, %v922
    %927 = vrot.lane.b32.xlu0 %v168, 72
    %v928 = vpop.permute.xlu0 %927
    %s930 = scalar_lea.vmem [#allocation8], 16
    %931 = vst.msk [vmem:[%s930] sm:$0xff] %vm200, %v928
    %932 = vst.msk [vmem:[%s930 + $0x8] sm:$0xff] %vm200, %v928
    %s934 = scalar_lea.vmem [#allocation6], 32
    %935 = vst.msk [vmem:[%s934] sm:$0xff] %vm200, %v197
    %936 = vst.msk [vmem:[%s934 + $0x8] sm:$0xff] %vm200, %v197
    %s937 = scalar_lea.vmem [#allocation8], 32
    %938 = vst.msk [vmem:[%s937] sm:$0xff] %vm200, %v423
    %939 = vst.msk [vmem:[%s937 + $0x8] sm:$0xff] %vm200, %v423
    %940 = vrot.lane.b32.xlu0 %v169, 80
    %v941 = vpop.permute.xlu0 %940
    %s943 = scalar_lea.vmem [#allocation6], 48
    %944 = vst.msk [vmem:[%s943] sm:$0xff] %vm200, %v941
    %945 = vst.msk [vmem:[%s943 + $0x8] sm:$0xff] %vm200, %v941
    %946 = vrot.lane.b32.xlu0 %v169, 72
    %v947 = vpop.permute.xlu0 %946
    %s949 = scalar_lea.vmem [#allocation8], 48
    %950 = vst.msk [vmem:[%s949] sm:$0xff] %vm200, %v947
    %951 = vst.msk [vmem:[%s949 + $0x8] sm:$0xff] %vm200, %v947
    // Predicated region
    $region22: #{gpt_crosslayer_block_forward.1} parent=1 // pred_check
      _
    $region23: #{gpt_crosslayer_block_forward.1} parent=1 // pred_check_branch
      %953 = sbr.rel (0) target = $region25
    $region24: #{gpt_crosslayer_block_forward.1} parent=1 // pred_region
      %s955 = ssub.s32 256, 256
      %956 = vsyncadd [#allocation4], %s955
      %s957 = sshll.u32 [#allocation5], 4
      %s958 = int_to_ptr.vmem [resolvable:$true] %s957
      %963 = dma.vmem_to_hbm [thread:$0]  %s958, 256, %s4, [#allocation4], 128, 128, 8
    $region25: #{gpt_crosslayer_block_forward.1} parent=1 // pred_fallthru
      _
    // Predicated region
    $region26: #{gpt_crosslayer_block_forward.1} parent=1 // pred_check
      _
    $region27: #{gpt_crosslayer_block_forward.1} parent=1 // pred_check_branch
      %965 = sbr.rel (0) target = $region29
    $region28: #{gpt_crosslayer_block_forward.1} parent=1 // pred_region
      %s967 = ssub.s32 1024, 1024
      %968 = vsyncadd [#allocation7], %s967
      %s969 = sshll.u32 [#allocation6], 4
      %s970 = int_to_ptr.vmem [resolvable:$true] %s969
      %975 = dma.vmem_to_hbm [thread:$0]  %s970, 1024, %s5, [#allocation7], 128, 128, 8
    $region29: #{gpt_crosslayer_block_forward.1} parent=1 // pred_fallthru
      _
    // Predicated region
    $region30: #{gpt_crosslayer_block_forward.1} parent=1 // pred_check
      _
    $region31: #{gpt_crosslayer_block_forward.1} parent=1 // pred_check_branch
      %977 = sbr.rel (0) target = $region33
    $region32: #{gpt_crosslayer_block_forward.1} parent=1 // pred_region
      %s979 = ssub.s32 1024, 1024
      %980 = vsyncadd [#allocation7], %s979
      %s981 = sshll.u32 [#allocation8], 4
      %s982 = int_to_ptr.vmem [resolvable:$true] %s981
      %987 = dma.vmem_to_hbm [thread:$0]  %s982, 1024, %s6, [#allocation7], 128, 128, 8
    $region33: #{gpt_crosslayer_block_forward.1} parent=1 // pred_fallthru
      _
    // Predicated region
    $region34: #{gpt_crosslayer_block_forward.1} parent=1 // pred_check
      _
    $region35: #{gpt_crosslayer_block_forward.1} parent=1 // pred_check_branch
      %989 = sbr.rel (0) target = $region37
    $region36: #{gpt_crosslayer_block_forward.1} parent=1 // pred_region
      %990 = dma.done [#allocation4], 256
    $region37: #{gpt_crosslayer_block_forward.1} parent=1 // pred_fallthru
      _
    // Predicated region
    $region38: #{gpt_crosslayer_block_forward.1} parent=1 // pred_check
      _
    $region39: #{gpt_crosslayer_block_forward.1} parent=1 // pred_check_branch
      %992 = sbr.rel (0) target = $region41
    $region40: #{gpt_crosslayer_block_forward.1} parent=1 // pred_region
      %993 = dma.done [#allocation7], 1024
    $region41: #{gpt_crosslayer_block_forward.1} parent=1 // pred_fallthru
      _
    // Predicated region
    $region42: #{gpt_crosslayer_block_forward.1} parent=1 // pred_check
      _
    $region43: #{gpt_crosslayer_block_forward.1} parent=1 // pred_check_branch
      %995 = sbr.rel (0) target = $region45
    $region44: #{gpt_crosslayer_block_forward.1} parent=1 // pred_region
      %996 = dma.done [#allocation7], 1024
    $region45: #{gpt_crosslayer_block_forward.1} parent=1 // pred_fallthru
      _
    %997 = vsyncpa [#allocation3], 1
    %998 = vsyncpa [#allocation4], 1
    %999 = vsyncpa [#allocation7], 1

</llo_original>
